<compile_context>
chip_gen: v6e
topology: v6e:2x2x1
jax: 0.10.0
libtpu: 0.0.40
codegen_flags: <defaults>
</compile_context>

<pallas_src>
import math

import jax
import jax.numpy as jnp
from jax.experimental import pallas as pl
from jax.experimental.pallas import tpu as pltpu


def _make_attn_kernel(cg, hw, eps, scale):
    """Build the fused AttnBlock kernel for one batch element.

    cg:    channels per GroupNorm group (C // 32)
    hw:    number of spatial positions (H*W)
    eps:   GroupNorm epsilon
    scale: attention logit scale (C ** -0.5)
    """
    inv_n = 1.0 / float(cg * hw)

    def kernel(x_ref, pmat_ref, gamma_ref, beta_ref,
               wq_ref, bq_ref, wk_ref, bk_ref, wv_ref, bv_ref,
               wp_ref, bp_ref, o_ref):
        # x_ref / o_ref: (C, HW)  -- HW on the 128-lane axis (lane-dense)
        # pmat_ref:      (C, C)   -- 0/1 same-group membership matrix
        # gamma/beta:    (C, 1)   -- GroupNorm affine params
        # wq/wk/wv/wp:   (C, C)   -- 1x1 conv weights (out_ch, in_ch)
        # bq/bk/bv/bp:   (C, 1)
        x = x_ref[...].astype(jnp.float32)                               # (C, HW)

        # ---- GroupNorm(32, C, eps=1e-6) ----
        # Per-channel sums via cheap lane reductions, then a tiny membership
        # matmul (C,C)@(C,1) that both sums over the channels of each group
        # and broadcasts the result back onto every channel of that group.
        csum = jnp.sum(x, axis=1, keepdims=True)                         # (C, 1)
        csq = jnp.sum(x * x, axis=1, keepdims=True)                      # (C, 1)
        pmat = pmat_ref[...]
        gsum = jnp.dot(pmat, csum, preferred_element_type=jnp.float32)   # (C, 1)
        gsq = jnp.dot(pmat, csq, preferred_element_type=jnp.float32)     # (C, 1)
        mean = gsum * inv_n
        var = gsq * inv_n - mean * mean                                  # biased var
        inv_std = jax.lax.rsqrt(var + eps)                               # EUP
        h = (x - mean) * (inv_std * gamma_ref[...]) + beta_ref[...]      # (C, HW)

        # ---- 1x1 conv projections: (C,C) @ (C,HW) -> (C,HW), lane-dense ----
        q = jnp.dot(wq_ref[...], h, preferred_element_type=jnp.float32) + bq_ref[...]
        k = jnp.dot(wk_ref[...], h, preferred_element_type=jnp.float32) + bk_ref[...]
        v = jnp.dot(wv_ref[...], h, preferred_element_type=jnp.float32) + bv_ref[...]
        # Fold the logit scale into q (C,HW) instead of scaling (HW,HW) logits.
        q = q * scale

        # ---- attention logits: logits[i, j] = sum_c q[c, i] k[c, j] ----
        qt = jnp.transpose(q)                                            # (HW, C), XLU
        logits = jnp.dot(qt, k, preferred_element_type=jnp.float32)      # (HW, HW)

        # ---- softmax over keys (last/lane axis) ----
        m = jnp.max(logits, axis=1, keepdims=True)
        e = jnp.exp(logits - m)
        denom = jnp.sum(e, axis=1, keepdims=True)
        probs = e * (1.0 / denom)                                        # (HW, HW)

        # ---- apply attention: att[c, i] = sum_j v[c, j] * probs[i, j] ----
        att = jax.lax.dot_general(
            v, probs, dimension_numbers=(((1,), (1,)), ((), ())),
            preferred_element_type=jnp.float32)                          # (C, HW)

        # ---- proj_out (1x1 conv) + residual ----
        out = jnp.dot(wp_ref[...], att, preferred_element_type=jnp.float32)
        out = out + bp_ref[...] + x
        o_ref[...] = out.astype(o_ref.dtype)

    return kernel


def attn_block_pallas(x3, pmat, gamma, beta, wq, bq, wk, bk, wv, bv, wp, bp,
                      *, num_groups, eps):
    # x3: (N, C, HW); params as documented in the kernel.
    N, C, HW = x3.shape
    cg = C // num_groups
    scale = float(C) ** (-0.5)
    kernel = _make_attn_kernel(cg, HW, eps, scale)

    def mat_spec():
        return pl.BlockSpec((C, C), lambda n: (0, 0))

    def vec_spec():
        return pl.BlockSpec((C, 1), lambda n: (0, 0))

    return pl.pallas_call(
        kernel,
        out_shape=jax.ShapeDtypeStruct((N, C, HW), x3.dtype),
        grid_spec=pltpu.PrefetchScalarGridSpec(
            num_scalar_prefetch=0,
            grid=(N,),
            in_specs=[
                pl.BlockSpec((None, C, HW), lambda n: (n, 0, 0)),   # x, batch squeezed
                mat_spec(),                                          # pmat
                vec_spec(), vec_spec(),                              # gamma, beta
                mat_spec(), vec_spec(),                              # wq, bq
                mat_spec(), vec_spec(),                              # wk, bk
                mat_spec(), vec_spec(),                              # wv, bv
                mat_spec(), vec_spec(),                              # wp, bp
            ],
            out_specs=pl.BlockSpec((None, C, HW), lambda n: (n, 0, 0)),
        ),
        compiler_params=pltpu.CompilerParams(
            dimension_semantics=("parallel",),                       # megacore split over batch
        ),
    )(x3, pmat, gamma, beta, wq, bq, wk, bk, wv, bv, wp, bp)


class AttnBlock:
    """JAX/Pallas port of the PyTorch AttnBlock (GroupNorm + single-head
    spatial self-attention with 1x1-conv q/k/v/proj_out and residual)."""

    NUM_GROUPS = 32
    EPS = 1e-6

    def __init__(self, in_channels, key=None):
        assert in_channels % self.NUM_GROUPS == 0, \
            "GroupNorm(32) requires in_channels to be a multiple of 32"
        if key is None:
            key = jax.random.PRNGKey(0)
        C = in_channels
        ks = jax.random.split(key, 10)
        bound = 1.0 / math.sqrt(C)  # PyTorch Conv2d default init bound (fan_in = C*1*1)

        def u(k, shape):
            return jax.random.uniform(k, shape, jnp.float32, -bound, bound)

        self.wq, self.bq = u(ks[0], (C, C)), u(ks[1], (C,))
        self.wk, self.bk = u(ks[2], (C, C)), u(ks[3], (C,))
        self.wv, self.bv = u(ks[4], (C, C)), u(ks[5], (C,))
        self.wp, self.bp = u(ks[6], (C, C)), u(ks[7], (C,))
        # GroupNorm affine params (PyTorch init is ones/zeros; perturb so the
        # affine path is actually exercised by the correctness check).
        self.gamma = 1.0 + 0.1 * jax.random.normal(ks[8], (C,), jnp.float32)
        self.beta = 0.1 * jax.random.normal(ks[9], (C,), jnp.float32)
        # 0/1 same-group membership matrix for the in-kernel group reduction.
        cg = C // self.NUM_GROUPS
        grp = jnp.arange(C) // cg
        self.pmat = (grp[:, None] == grp[None, :]).astype(jnp.float32)
        self.in_channels = C

    def __call__(self, x):
        # x: (N, C, H, W) NCHW, like PyTorch. NCHW -> (N, C, H*W) is a free,
        # contiguous reshape: no wrapper transposes or pads on the hot path.
        N, C, H, W = x.shape
        x3 = x.reshape(N, C, H * W)
        out3 = attn_block_pallas(
            x3, self.pmat,
            self.gamma.reshape(C, 1), self.beta.reshape(C, 1),
            self.wq, self.bq.reshape(C, 1),
            self.wk, self.bk.reshape(C, 1),
            self.wv, self.bv.reshape(C, 1),
            self.wp, self.bp.reshape(C, 1),
            num_groups=self.NUM_GROUPS, eps=self.EPS)
        return out3.reshape(N, C, H, W)


def _reference(block, x):
    """Pure-JAX reference mirroring the PyTorch forward."""
    N, C, H, W = x.shape
    G = block.NUM_GROUPS
    hp = jax.lax.Precision.HIGHEST

    xg = x.reshape(N, G, -1)
    mean = xg.mean(axis=2, keepdims=True)
    var = xg.var(axis=2, keepdims=True)                    # biased, like PyTorch GN
    h = ((xg - mean) / jnp.sqrt(var + block.EPS)).reshape(N, C, H, W)
    h = h * block.gamma.reshape(1, C, 1, 1) + block.beta.reshape(1, C, 1, 1)

    hf = h.reshape(N, C, H * W)
    q = jnp.einsum("oc,nci->noi", block.wq, hf, precision=hp) + block.bq.reshape(1, C, 1)
    k = jnp.einsum("oc,nci->noi", block.wk, hf, precision=hp) + block.bk.reshape(1, C, 1)
    v = jnp.einsum("oc,nci->noi", block.wv, hf, precision=hp) + block.bv.reshape(1, C, 1)

    logits = jnp.einsum("nci,ncj->nij", q, k, precision=hp) * (float(C) ** (-0.5))
    probs = jax.nn.softmax(logits, axis=2)
    att = jnp.einsum("ncj,nij->nci", v, probs, precision=hp)

    out = jnp.einsum("oc,nci->noi", block.wp, att, precision=hp) + block.bp.reshape(1, C, 1)
    return x + out.reshape(N, C, H, W)


if __name__ == "__main__":
    key = jax.random.PRNGKey(0)
    k_x, k_p = jax.random.split(key)

    # GroupNorm(32) requires C % 32 == 0; H*W = 256 keeps the lane axis dense.
    N, C, H, W = 2, 64, 16, 16
    x = jax.random.normal(k_x, (N, C, H, W), jnp.float32)

    block = AttnBlock(C, key=k_p)
    out = jax.block_until_ready(block(x))
    assert out.shape == (N, C, H, W)
    assert bool(jnp.all(jnp.isfinite(out)))

    ref = _reference(block, x)
    err = float(jnp.max(jnp.abs(out - ref)))
    # Tolerance allows for MXU bf16-pass rounding differences vs the HIGHEST-
    # precision reference; structural bugs would be orders of magnitude larger.
    assert jnp.allclose(out, ref, atol=5e-3, rtol=5e-3), f"max abs err {err}"

    print("KERNEL_OK")
</pallas_src>

<mosaic_0001>
module attributes {stable_mosaic.version = 11 : i64} {
  func.func @kernel(%arg0: i32, %arg1: memref<1x64x256xf32, #tpu.memory_space<vmem>>, %arg2: memref<64x64xf32, #tpu.memory_space<vmem>>, %arg3: memref<64x1xf32, #tpu.memory_space<vmem>>, %arg4: memref<64x1xf32, #tpu.memory_space<vmem>>, %arg5: memref<64x64xf32, #tpu.memory_space<vmem>>, %arg6: memref<64x1xf32, #tpu.memory_space<vmem>>, %arg7: memref<64x64xf32, #tpu.memory_space<vmem>>, %arg8: memref<64x1xf32, #tpu.memory_space<vmem>>, %arg9: memref<64x64xf32, #tpu.memory_space<vmem>>, %arg10: memref<64x1xf32, #tpu.memory_space<vmem>>, %arg11: memref<64x64xf32, #tpu.memory_space<vmem>>, %arg12: memref<64x1xf32, #tpu.memory_space<vmem>>, %arg13: memref<1x64x256xf32, #tpu.memory_space<vmem>>) attributes {dimension_semantics = [#tpu.dimension_semantics<parallel>], iteration_bounds = array<i64: 2>, scalar_prefetch = 0 : i64, scratch_operands = 0 : i64, tpu.core_type = #tpu.core_type<tc>, window_params = [{transform_indices = @transform_0, window_bounds = array<i64: 1, 64, 256>}, {pipeline_mode = #tpu.pipeline_mode<synchronous>, transform_indices = @transform_1, window_bounds = array<i64: 64, 64>}, {pipeline_mode = #tpu.pipeline_mode<synchronous>, transform_indices = @transform_2, window_bounds = array<i64: 64, 1>}, {pipeline_mode = #tpu.pipeline_mode<synchronous>, transform_indices = @transform_3, window_bounds = array<i64: 64, 1>}, {pipeline_mode = #tpu.pipeline_mode<synchronous>, transform_indices = @transform_4, window_bounds = array<i64: 64, 64>}, {pipeline_mode = #tpu.pipeline_mode<synchronous>, transform_indices = @transform_5, window_bounds = array<i64: 64, 1>}, {pipeline_mode = #tpu.pipeline_mode<synchronous>, transform_indices = @transform_6, window_bounds = array<i64: 64, 64>}, {pipeline_mode = #tpu.pipeline_mode<synchronous>, transform_indices = @transform_7, window_bounds = array<i64: 64, 1>}, {pipeline_mode = #tpu.pipeline_mode<synchronous>, transform_indices = @transform_8, window_bounds = array<i64: 64, 64>}, {pipeline_mode = #tpu.pipeline_mode<synchronous>, transform_indices = @transform_9, window_bounds = array<i64: 64, 1>}, {pipeline_mode = #tpu.pipeline_mode<synchronous>, transform_indices = @transform_10, window_bounds = array<i64: 64, 64>}, {pipeline_mode = #tpu.pipeline_mode<synchronous>, transform_indices = @transform_11, window_bounds = array<i64: 64, 1>}, {transform_indices = @transform_12, window_bounds = array<i64: 1, 64, 256>}]} {
    %c0 = arith.constant 0 : index
    %c0_0 = arith.constant 0 : index
    %c0_1 = arith.constant 0 : index
    %0 = vector.load %arg1[%c0, %c0_0, %c0_1] : memref<1x64x256xf32, #tpu.memory_space<vmem>>, vector<1x64x256xf32>
    %1 = vector.shape_cast %0 : vector<1x64x256xf32> to vector<64x256xf32>
    %cst = arith.constant dense<0.000000e+00> : vector<64xf32>
    %2 = vector.multi_reduction <add>, %1, %cst [1] : vector<64x256xf32> to vector<64xf32>
    %3 = vector.shape_cast %2 : vector<64xf32> to vector<64x1xf32>
    %4 = arith.mulf %1, %1 : vector<64x256xf32>
    %cst_2 = arith.constant dense<0.000000e+00> : vector<64xf32>
    %5 = vector.multi_reduction <add>, %4, %cst_2 [1] : vector<64x256xf32> to vector<64xf32>
    %6 = vector.shape_cast %5 : vector<64xf32> to vector<64x1xf32>
    %c0_3 = arith.constant 0 : index
    %c0_4 = arith.constant 0 : index
    %7 = vector.load %arg2[%c0_3, %c0_4] : memref<64x64xf32, #tpu.memory_space<vmem>>, vector<64x64xf32>
    %cst_5 = arith.constant dense<0.000000e+00> : vector<64x1xf32>
    %8 = tpu.matmul %7, %3, %cst_5 {dimension_numbers = #tpu.dot_dimension_numbers<[1], [0], [0], [1], [0, 0, 1, 1], [], []>} : vector<64x64xf32>, vector<64x1xf32>, vector<64x1xf32> -> vector<64x1xf32>
    %cst_6 = arith.constant dense<0.000000e+00> : vector<64x1xf32>
    %9 = tpu.matmul %7, %6, %cst_6 {dimension_numbers = #tpu.dot_dimension_numbers<[1], [0], [0], [1], [0, 0, 1, 1], [], []>} : vector<64x64xf32>, vector<64x1xf32>, vector<64x1xf32> -> vector<64x1xf32>
    %cst_7 = arith.constant 0.001953125 : f32
    %10 = vector.broadcast %cst_7 : f32 to vector<64x1xf32>
    %11 = arith.mulf %8, %10 : vector<64x1xf32>
    %cst_8 = arith.constant 0.001953125 : f32
    %12 = vector.broadcast %cst_8 : f32 to vector<64x1xf32>
    %13 = arith.mulf %9, %12 : vector<64x1xf32>
    %14 = arith.mulf %11, %11 : vector<64x1xf32>
    %15 = arith.subf %13, %14 : vector<64x1xf32>
    %cst_9 = arith.constant 9.99999997E-7 : f32
    %16 = vector.broadcast %cst_9 : f32 to vector<64x1xf32>
    %17 = arith.addf %15, %16 : vector<64x1xf32>
    %18 = math.rsqrt %17 : vector<64x1xf32>
    %19 = vector.broadcast %11 : vector<64x1xf32> to vector<64x256xf32>
    %20 = arith.subf %1, %19 : vector<64x256xf32>
    %c0_10 = arith.constant 0 : index
    %c0_11 = arith.constant 0 : index
    %21 = vector.load %arg3[%c0_10, %c0_11] : memref<64x1xf32, #tpu.memory_space<vmem>>, vector<64x1xf32>
    %22 = arith.mulf %18, %21 : vector<64x1xf32>
    %23 = vector.broadcast %22 : vector<64x1xf32> to vector<64x256xf32>
    %24 = arith.mulf %20, %23 : vector<64x256xf32>
    %c0_12 = arith.constant 0 : index
    %c0_13 = arith.constant 0 : index
    %25 = vector.load %arg4[%c0_12, %c0_13] : memref<64x1xf32, #tpu.memory_space<vmem>>, vector<64x1xf32>
    %26 = vector.broadcast %25 : vector<64x1xf32> to vector<64x256xf32>
    %27 = arith.addf %24, %26 : vector<64x256xf32>
    %c0_14 = arith.constant 0 : index
    %c0_15 = arith.constant 0 : index
    %28 = vector.load %arg5[%c0_14, %c0_15] : memref<64x64xf32, #tpu.memory_space<vmem>>, vector<64x64xf32>
    %cst_16 = arith.constant dense<0.000000e+00> : vector<64x256xf32>
    %29 = tpu.matmul %28, %27, %cst_16 {dimension_numbers = #tpu.dot_dimension_numbers<[1], [0], [0], [1], [0, 0, 1, 1], [], []>} : vector<64x64xf32>, vector<64x256xf32>, vector<64x256xf32> -> vector<64x256xf32>
    %c0_17 = arith.constant 0 : index
    %c0_18 = arith.constant 0 : index
    %30 = vector.load %arg6[%c0_17, %c0_18] : memref<64x1xf32, #tpu.memory_space<vmem>>, vector<64x1xf32>
    %31 = vector.broadcast %30 : vector<64x1xf32> to vector<64x256xf32>
    %32 = arith.addf %29, %31 : vector<64x256xf32>
    %c0_19 = arith.constant 0 : index
    %c0_20 = arith.constant 0 : index
    %33 = vector.load %arg7[%c0_19, %c0_20] : memref<64x64xf32, #tpu.memory_space<vmem>>, vector<64x64xf32>
    %cst_21 = arith.constant dense<0.000000e+00> : vector<64x256xf32>
    %34 = tpu.matmul %33, %27, %cst_21 {dimension_numbers = #tpu.dot_dimension_numbers<[1], [0], [0], [1], [0, 0, 1, 1], [], []>} : vector<64x64xf32>, vector<64x256xf32>, vector<64x256xf32> -> vector<64x256xf32>
    %c0_22 = arith.constant 0 : index
    %c0_23 = arith.constant 0 : index
    %35 = vector.load %arg8[%c0_22, %c0_23] : memref<64x1xf32, #tpu.memory_space<vmem>>, vector<64x1xf32>
    %36 = vector.broadcast %35 : vector<64x1xf32> to vector<64x256xf32>
    %37 = arith.addf %34, %36 : vector<64x256xf32>
    %c0_24 = arith.constant 0 : index
    %c0_25 = arith.constant 0 : index
    %38 = vector.load %arg9[%c0_24, %c0_25] : memref<64x64xf32, #tpu.memory_space<vmem>>, vector<64x64xf32>
    %cst_26 = arith.constant dense<0.000000e+00> : vector<64x256xf32>
    %39 = tpu.matmul %38, %27, %cst_26 {dimension_numbers = #tpu.dot_dimension_numbers<[1], [0], [0], [1], [0, 0, 1, 1], [], []>} : vector<64x64xf32>, vector<64x256xf32>, vector<64x256xf32> -> vector<64x256xf32>
    %c0_27 = arith.constant 0 : index
    %c0_28 = arith.constant 0 : index
    %40 = vector.load %arg10[%c0_27, %c0_28] : memref<64x1xf32, #tpu.memory_space<vmem>>, vector<64x1xf32>
    %41 = vector.broadcast %40 : vector<64x1xf32> to vector<64x256xf32>
    %42 = arith.addf %39, %41 : vector<64x256xf32>
    %cst_29 = arith.constant 1.250000e-01 : f32
    %43 = vector.broadcast %cst_29 : f32 to vector<64x256xf32>
    %44 = arith.mulf %32, %43 : vector<64x256xf32>
    %45 = tpu.transpose %44, [1, 0] : vector<64x256xf32> -> vector<256x64xf32>
    %cst_30 = arith.constant dense<0.000000e+00> : vector<256x256xf32>
    %46 = tpu.matmul %45, %37, %cst_30 {dimension_numbers = #tpu.dot_dimension_numbers<[1], [0], [0], [1], [0, 0, 1, 1], [], []>} : vector<256x64xf32>, vector<64x256xf32>, vector<256x256xf32> -> vector<256x256xf32>
    %cst_31 = arith.constant dense<0xFF800000> : vector<256xf32>
    %47 = vector.multi_reduction <maximumf>, %46, %cst_31 [1] : vector<256x256xf32> to vector<256xf32>
    %48 = vector.shape_cast %47 : vector<256xf32> to vector<256x1xf32>
    %49 = vector.broadcast %48 : vector<256x1xf32> to vector<256x256xf32>
    %50 = arith.subf %46, %49 : vector<256x256xf32>
    %51 = math.exp %50 : vector<256x256xf32>
    %cst_32 = arith.constant dense<0.000000e+00> : vector<256xf32>
    %52 = vector.multi_reduction <add>, %51, %cst_32 [1] : vector<256x256xf32> to vector<256xf32>
    %53 = vector.shape_cast %52 : vector<256xf32> to vector<256x1xf32>
    %cst_33 = arith.constant 1.000000e+00 : f32
    %54 = vector.broadcast %cst_33 : f32 to vector<256x1xf32>
    %55 = arith.divf %54, %53 : vector<256x1xf32>
    %56 = vector.broadcast %55 : vector<256x1xf32> to vector<256x256xf32>
    %57 = arith.mulf %51, %56 : vector<256x256xf32>
    %cst_34 = arith.constant dense<0.000000e+00> : vector<64x256xf32>
    %58 = tpu.matmul %42, %57, %cst_34 {dimension_numbers = #tpu.dot_dimension_numbers<[1], [1], [0], [0], [0, 0, 1, 0], [], []>} : vector<64x256xf32>, vector<256x256xf32>, vector<64x256xf32> -> vector<64x256xf32>
    %c0_35 = arith.constant 0 : index
    %c0_36 = arith.constant 0 : index
    %59 = vector.load %arg11[%c0_35, %c0_36] : memref<64x64xf32, #tpu.memory_space<vmem>>, vector<64x64xf32>
    %cst_37 = arith.constant dense<0.000000e+00> : vector<64x256xf32>
    %60 = tpu.matmul %59, %58, %cst_37 {dimension_numbers = #tpu.dot_dimension_numbers<[1], [0], [0], [1], [0, 0, 1, 1], [], []>} : vector<64x64xf32>, vector<64x256xf32>, vector<64x256xf32> -> vector<64x256xf32>
    %c0_38 = arith.constant 0 : index
    %c0_39 = arith.constant 0 : index
    %61 = vector.load %arg12[%c0_38, %c0_39] : memref<64x1xf32, #tpu.memory_space<vmem>>, vector<64x1xf32>
    %62 = vector.broadcast %61 : vector<64x1xf32> to vector<64x256xf32>
    %63 = arith.addf %60, %62 : vector<64x256xf32>
    %64 = arith.addf %63, %1 : vector<64x256xf32>
    %c0_40 = arith.constant 0 : index
    %c0_41 = arith.constant 0 : index
    %c0_42 = arith.constant 0 : index
    %65 = vector.load %arg13[%c0_40, %c0_41, %c0_42] : memref<1x64x256xf32, #tpu.memory_space<vmem>>, vector<1x64x256xf32>
    %66 = vector.shape_cast %65 : vector<1x64x256xf32> to vector<64x256xf32>
    %67 = vector.shape_cast %64 : vector<64x256xf32> to vector<1x64x256xf32>
    tpu.vector_store %arg13[%c0_40, %c0_41, %c0_42], %67 {strides = array<i32>} : memref<1x64x256xf32, #tpu.memory_space<vmem>>, vector<1x64x256xf32>,
    return
  }
  func.func @transform_0(%arg0: i32) -> (i32, i32, i32) {
    %c0_i32 = arith.constant 0 : i32
    %c0_i32_0 = arith.constant 0 : i32
    %c0_i32_1 = arith.constant 0 : i32
    return %arg0, %c0_i32, %c0_i32_0 : i32, i32, i32
  }
  func.func @transform_1(%arg0: i32) -> (i32, i32) {
    %c0_i32 = arith.constant 0 : i32
    %c0_i32_0 = arith.constant 0 : i32
    %c0_i32_1 = arith.constant 0 : i32
    return %c0_i32, %c0_i32_0 : i32, i32
  }
  func.func @transform_2(%arg0: i32) -> (i32, i32) {
    %c0_i32 = arith.constant 0 : i32
    %c0_i32_0 = arith.constant 0 : i32
    %c0_i32_1 = arith.constant 0 : i32
    return %c0_i32, %c0_i32_0 : i32, i32
  }
  func.func @transform_3(%arg0: i32) -> (i32, i32) {
    %c0_i32 = arith.constant 0 : i32
    %c0_i32_0 = arith.constant 0 : i32
    %c0_i32_1 = arith.constant 0 : i32
    return %c0_i32, %c0_i32_0 : i32, i32
  }
  func.func @transform_4(%arg0: i32) -> (i32, i32) {
    %c0_i32 = arith.constant 0 : i32
    %c0_i32_0 = arith.constant 0 : i32
    %c0_i32_1 = arith.constant 0 : i32
    return %c0_i32, %c0_i32_0 : i32, i32
  }
  func.func @transform_5(%arg0: i32) -> (i32, i32) {
    %c0_i32 = arith.constant 0 : i32
    %c0_i32_0 = arith.constant 0 : i32
    %c0_i32_1 = arith.constant 0 : i32
    return %c0_i32, %c0_i32_0 : i32, i32
  }
  func.func @transform_6(%arg0: i32) -> (i32, i32) {
    %c0_i32 = arith.constant 0 : i32
    %c0_i32_0 = arith.constant 0 : i32
    %c0_i32_1 = arith.constant 0 : i32
    return %c0_i32, %c0_i32_0 : i32, i32
  }
  func.func @transform_7(%arg0: i32) -> (i32, i32) {
    %c0_i32 = arith.constant 0 : i32
    %c0_i32_0 = arith.constant 0 : i32
    %c0_i32_1 = arith.constant 0 : i32
    return %c0_i32, %c0_i32_0 : i32, i32
  }
  func.func @transform_8(%arg0: i32) -> (i32, i32) {
    %c0_i32 = arith.constant 0 : i32
    %c0_i32_0 = arith.constant 0 : i32
    %c0_i32_1 = arith.constant 0 : i32
    return %c0_i32, %c0_i32_0 : i32, i32
  }
  func.func @transform_9(%arg0: i32) -> (i32, i32) {
    %c0_i32 = arith.constant 0 : i32
    %c0_i32_0 = arith.constant 0 : i32
    %c0_i32_1 = arith.constant 0 : i32
    return %c0_i32, %c0_i32_0 : i32, i32
  }
  func.func @transform_10(%arg0: i32) -> (i32, i32) {
    %c0_i32 = arith.constant 0 : i32
    %c0_i32_0 = arith.constant 0 : i32
    %c0_i32_1 = arith.constant 0 : i32
    return %c0_i32, %c0_i32_0 : i32, i32
  }
  func.func @transform_11(%arg0: i32) -> (i32, i32) {
    %c0_i32 = arith.constant 0 : i32
    %c0_i32_0 = arith.constant 0 : i32
    %c0_i32_1 = arith.constant 0 : i32
    return %c0_i32, %c0_i32_0 : i32, i32
  }
  func.func @transform_12(%arg0: i32) -> (i32, i32, i32) {
    %c0_i32 = arith.constant 0 : i32
    %c0_i32_0 = arith.constant 0 : i32
    %c0_i32_1 = arith.constant 0 : i32
    return %arg0, %c0_i32, %c0_i32_0 : i32, i32, i32
  }
}

</mosaic_0001>

<llo_original>
// kernel: tpu_custom_call.1
$region0: #{tpu_custom_call.1}
  #allocation0 [shape = 'u32[]', space=smem, size = 0x4, offset = 0x4, fixed_abs, tag = 'smem constant byte address 0x4 - core index']
  #allocation1 [shape = 'u32[144,128]{1,0:T(1,128)}', space=vmem, size = 0x12000, scoped, tag = 'internal scratch']
  %s0 = inlined_call_operand.vmem [shape: f32[2,64,256], index: 0, kind: input, shape index: {}]
  %s1 = inlined_call_operand.vmem [shape: f32[64,64], index: 1, kind: input, shape index: {}]
  %s2 = inlined_call_operand.vmem [shape: f32[64,1], index: 2, kind: input, shape index: {}]
  %s3 = inlined_call_operand.vmem [shape: f32[64,1], index: 3, kind: input, shape index: {}]
  %s4 = inlined_call_operand.vmem [shape: f32[64,64], index: 4, kind: input, shape index: {}]
  %s5 = inlined_call_operand.vmem [shape: f32[64,1], index: 5, kind: input, shape index: {}]
  %s6 = inlined_call_operand.hbm [shape: f32[64,64], index: 6, kind: input, shape index: {}]
  %s7 = inlined_call_operand.vmem [shape: f32[64,1], index: 7, kind: input, shape index: {}]
  %s8 = inlined_call_operand.hbm [shape: f32[64,64], index: 8, kind: input, shape index: {}]
  %s9 = inlined_call_operand.vmem [shape: f32[64,1], index: 9, kind: input, shape index: {}]
  %s10 = inlined_call_operand.hbm [shape: f32[64,64], index: 10, kind: input, shape index: {}]
  %s11 = inlined_call_operand.vmem [shape: f32[64,1], index: 11, kind: input, shape index: {}]
  %s12 = inlined_call_operand.hbm [shape: f32[2,64,256], index: 12, kind: output, shape index: {}]
  %s13 = sld [smem:[#allocation0]]
  $region93: #{tpu_custom_call.1} parent=0
    _
  %s15 = ssub.s32 1, %s13
  %s16 = scalar_select 0, %s15, %s13
  $region1: #{tpu_custom_call.1} parent=0
    #allocation2 [shape = 'u8[32768]{0}', space=vmem, size = 0x8000, scoped, tag = 'input window, operand 6, single buffered']
    #allocation3 [shape = 's32[2]{0}', space=sflag, size = 0x8, scoped, tag = 'scoped memory for tpu_custom_call.1']
    #allocation4 [shape = 's32[2]{0}', space=sflag, size = 0x8, scoped, tag = 'scoped memory for tpu_custom_call.1']
    #allocation5 [shape = 'u8[32768]{0}', space=vmem, size = 0x8000, scoped, tag = 'input window, operand 8, single buffered']
    #allocation6 [shape = 's32[1]{0}', space=sflag, size = 0x4, scoped, tag = 'scoped memory for tpu_custom_call.1']
    #allocation7 [shape = 'u8[32768]{0}', space=vmem, size = 0x8000, scoped, tag = 'input window, operand 10, single buffered']
    #allocation8 [shape = 'u8[131072]{0}', space=vmem, size = 0x20000, scoped, tag = 'output window, operand 0']
    %17 = vsyncpa [#allocation3], 0
    %18 = vsyncpa [#allocation6], 0
    %19 = vsyncpa [#allocation4], 0
    %s20 = scalar_lea.sflag [#allocation4], 1
    %21 = vsyncpa %s20, 0
    loop: start=0, step=1, limit=4
    $region2: #{tpu_custom_call.1} parent=1 // loop_pre_header
      _
    $region3: #{tpu_custom_call.1} parent=1 // loop_header
      %s23 = sphi 0, %s27
      %p24 = scmp.ge.s32.totalorder %s23, 4
      %s33 = sphi 0, %s35
      %s36 = sphi 0, %s33
      %s37 = sphi 0, %s36
      %s53 = sphi 0, %s37
      %s57 = sphi 0, %s57
      %s59 = sphi 0, %s57
      %s60 = sphi 0, %s59
      %s74 = sphi 0, %s60
      %s78 = sphi 0, %s78
      %s80 = sphi 0, %s78
      %s81 = sphi 0, %s80
      %s95 = sphi 0, %s81
      %s99 = sphi 0, %s99
      %s101 = sphi 0, %s99
      %s102 = sphi 0, %s101
      %s116 = sphi 0, %s102
      %s120 = sphi 0, %s120
      %s122 = sphi 0, %s120
      %s123 = sphi 0, %s122
      %s137 = sphi 0, %s123
      %s141 = sphi 0, %s141
      %s143 = sphi 0, %s141
      %s144 = sphi 0, %s143
      %s158 = sphi 0, %s144
      %s162 = sphi 0, %s162
      %s164 = sphi 0, %s162
      %s165 = sphi 0, %s164
      %s179 = sphi 0, %s165
      %s183 = sphi 0, %s183
      %s185 = sphi 0, %s183
      %s186 = sphi 0, %s185
      %s200 = sphi 0, %s186
      %s204 = sphi 0, %s204
      %s206 = sphi 0, %s204
      %s207 = sphi 0, %s206
      %s221 = sphi 0, %s207
      %s225 = sphi 0, %s225
      %s227 = sphi 0, %s225
      %s228 = sphi 0, %s227
      %s242 = sphi 0, %s228
      %s246 = sphi 0, %s246
      %s248 = sphi 0, %s246
      %s249 = sphi 0, %s248
      %s263 = sphi 0, %s249
      %s267 = sphi 0, %s267
      %s269 = sphi 0, %s267
      %s270 = sphi 0, %s269
      %s284 = sphi 0, %s270
      %s290 = sphi 0, %s292
      %s293 = sphi 0, %s290
      %s294 = sphi 0, %s293
      %s310 = sphi 0, %s294
    $region4: #{tpu_custom_call.1} parent=1 // loop_header_branch
      %26 = sbr.rel (%p24) target = $region8
    $region5: #{tpu_custom_call.1} parent=1 // loop_body
      %s28 = ssub.s32 %s23, 1
      %s29 = ssub.s32 %s23, 2
      %s30 = sadd.s32 %s23, 1
      %s31 = ssub.s32 %s23, %s30
      %p32 = scmp.eq.s32.totalorder %s31, 0
      %s34 = sadd.s32 %s33, 1
      %s35 = scalar_select %p32, %s33, %s34
      %p38 = pneg %p32
      %p39 = scmp.eq.s32.totalorder %s23, 1
      %p40 = por %p38, %p39
      %p41 = scmp.ne.s32.totalorder %s33, %s36
      %p42 = scmp.eq.s32.totalorder %s23, 0
      %p43 = por %p41, %p42
      %p44 = scmp.ne.s32.totalorder %s33, %s36
      %p45 = scmp.eq.s32.totalorder %s28, 1
      %p46 = por %p44, %p45
      %p47 = scmp.ne.s32.totalorder %s36, %s37
      %p48 = scmp.eq.s32.totalorder %s28, 0
      %p49 = por %p47, %p48
      %p50 = scmp.ne.s32.totalorder %s36, %s37
      %p51 = scmp.eq.s32.totalorder %s29, 1
      %p52 = por %p50, %p51
      %p54 = scmp.ne.s32.totalorder %s37, %s53
      %p55 = scmp.eq.s32.totalorder %s29, 0
      %p56 = por %p54, %p55
      %s58 = sadd.s32 %s57, 1
      %p61 = scmp.eq.s32.totalorder %s23, 1
      %p62 = scmp.ne.s32.totalorder %s57, %s59
      %p63 = scmp.eq.s32.totalorder %s23, 0
      %p64 = por %p62, %p63
      %p65 = scmp.ne.s32.totalorder %s57, %s59
      %p66 = scmp.eq.s32.totalorder %s28, 1
      %p67 = por %p65, %p66
      %p68 = scmp.ne.s32.totalorder %s59, %s60
      %p69 = scmp.eq.s32.totalorder %s28, 0
      %p70 = por %p68, %p69
      %p71 = scmp.ne.s32.totalorder %s59, %s60
      %p72 = scmp.eq.s32.totalorder %s29, 1
      %p73 = por %p71, %p72
      %p75 = scmp.ne.s32.totalorder %s60, %s74
      %p76 = scmp.eq.s32.totalorder %s29, 0
      %p77 = por %p75, %p76
      %s79 = sadd.s32 %s78, 1
      %p82 = scmp.eq.s32.totalorder %s23, 1
      %p83 = scmp.ne.s32.totalorder %s78, %s80
      %p84 = scmp.eq.s32.totalorder %s23, 0
      %p85 = por %p83, %p84
      %p86 = scmp.ne.s32.totalorder %s78, %s80
      %p87 = scmp.eq.s32.totalorder %s28, 1
      %p88 = por %p86, %p87
      %p89 = scmp.ne.s32.totalorder %s80, %s81
      %p90 = scmp.eq.s32.totalorder %s28, 0
      %p91 = por %p89, %p90
      %p92 = scmp.ne.s32.totalorder %s80, %s81
      %p93 = scmp.eq.s32.totalorder %s29, 1
      %p94 = por %p92, %p93
      %p96 = scmp.ne.s32.totalorder %s81, %s95
      %p97 = scmp.eq.s32.totalorder %s29, 0
      %p98 = por %p96, %p97
      %s100 = sadd.s32 %s99, 1
      %p103 = scmp.eq.s32.totalorder %s23, 1
      %p104 = scmp.ne.s32.totalorder %s99, %s101
      %p105 = scmp.eq.s32.totalorder %s23, 0
      %p106 = por %p104, %p105
      %p107 = scmp.ne.s32.totalorder %s99, %s101
      %p108 = scmp.eq.s32.totalorder %s28, 1
      %p109 = por %p107, %p108
      %p110 = scmp.ne.s32.totalorder %s101, %s102
      %p111 = scmp.eq.s32.totalorder %s28, 0
      %p112 = por %p110, %p111
      %p113 = scmp.ne.s32.totalorder %s101, %s102
      %p114 = scmp.eq.s32.totalorder %s29, 1
      %p115 = por %p113, %p114
      %p117 = scmp.ne.s32.totalorder %s102, %s116
      %p118 = scmp.eq.s32.totalorder %s29, 0
      %p119 = por %p117, %p118
      %s121 = sadd.s32 %s120, 1
      %p124 = scmp.eq.s32.totalorder %s23, 1
      %p125 = scmp.ne.s32.totalorder %s120, %s122
      %p126 = scmp.eq.s32.totalorder %s23, 0
      %p127 = por %p125, %p126
      %p128 = scmp.ne.s32.totalorder %s120, %s122
      %p129 = scmp.eq.s32.totalorder %s28, 1
      %p130 = por %p128, %p129
      %p131 = scmp.ne.s32.totalorder %s122, %s123
      %p132 = scmp.eq.s32.totalorder %s28, 0
      %p133 = por %p131, %p132
      %p134 = scmp.ne.s32.totalorder %s122, %s123
      %p135 = scmp.eq.s32.totalorder %s29, 1
      %p136 = por %p134, %p135
      %p138 = scmp.ne.s32.totalorder %s123, %s137
      %p139 = scmp.eq.s32.totalorder %s29, 0
      %p140 = por %p138, %p139
      %s142 = sadd.s32 %s141, 1
      %p145 = scmp.eq.s32.totalorder %s23, 1
      %p146 = scmp.ne.s32.totalorder %s141, %s143
      %p147 = scmp.eq.s32.totalorder %s23, 0
      %p148 = por %p146, %p147
      %p149 = scmp.ne.s32.totalorder %s141, %s143
      %p150 = scmp.eq.s32.totalorder %s28, 1
      %p151 = por %p149, %p150
      %p152 = scmp.ne.s32.totalorder %s143, %s144
      %p153 = scmp.eq.s32.totalorder %s28, 0
      %p154 = por %p152, %p153
      %p155 = scmp.ne.s32.totalorder %s143, %s144
      %p156 = scmp.eq.s32.totalorder %s29, 1
      %p157 = por %p155, %p156
      %p159 = scmp.ne.s32.totalorder %s144, %s158
      %p160 = scmp.eq.s32.totalorder %s29, 0
      %p161 = por %p159, %p160
      %s163 = sadd.s32 %s162, 1
      %p166 = scmp.eq.s32.totalorder %s23, 1
      %p167 = scmp.ne.s32.totalorder %s162, %s164
      %p168 = scmp.eq.s32.totalorder %s23, 0
      %p169 = por %p167, %p168
      %p170 = scmp.ne.s32.totalorder %s162, %s164
      %p171 = scmp.eq.s32.totalorder %s28, 1
      %p172 = por %p170, %p171
      %p173 = scmp.ne.s32.totalorder %s164, %s165
      %p174 = scmp.eq.s32.totalorder %s28, 0
      %p175 = por %p173, %p174
      %p176 = scmp.ne.s32.totalorder %s164, %s165
      %p177 = scmp.eq.s32.totalorder %s29, 1
      %p178 = por %p176, %p177
      %p180 = scmp.ne.s32.totalorder %s165, %s179
      %p181 = scmp.eq.s32.totalorder %s29, 0
      %p182 = por %p180, %p181
      %s184 = sadd.s32 %s183, 1
      %p187 = scmp.eq.s32.totalorder %s23, 1
      %p188 = scmp.ne.s32.totalorder %s183, %s185
      %p189 = scmp.eq.s32.totalorder %s23, 0
      %p190 = por %p188, %p189
      %p191 = scmp.ne.s32.totalorder %s183, %s185
      %p192 = scmp.eq.s32.totalorder %s28, 1
      %p193 = por %p191, %p192
      %p194 = scmp.ne.s32.totalorder %s185, %s186
      %p195 = scmp.eq.s32.totalorder %s28, 0
      %p196 = por %p194, %p195
      %p197 = scmp.ne.s32.totalorder %s185, %s186
      %p198 = scmp.eq.s32.totalorder %s29, 1
      %p199 = por %p197, %p198
      %p201 = scmp.ne.s32.totalorder %s186, %s200
      %p202 = scmp.eq.s32.totalorder %s29, 0
      %p203 = por %p201, %p202
      %s205 = sadd.s32 %s204, 1
      %p208 = scmp.eq.s32.totalorder %s23, 1
      %p209 = scmp.ne.s32.totalorder %s204, %s206
      %p210 = scmp.eq.s32.totalorder %s23, 0
      %p211 = por %p209, %p210
      %p212 = scmp.ne.s32.totalorder %s204, %s206
      %p213 = scmp.eq.s32.totalorder %s28, 1
      %p214 = por %p212, %p213
      %p215 = scmp.ne.s32.totalorder %s206, %s207
      %p216 = scmp.eq.s32.totalorder %s28, 0
      %p217 = por %p215, %p216
      %p218 = scmp.ne.s32.totalorder %s206, %s207
      %p219 = scmp.eq.s32.totalorder %s29, 1
      %p220 = por %p218, %p219
      %p222 = scmp.ne.s32.totalorder %s207, %s221
      %p223 = scmp.eq.s32.totalorder %s29, 0
      %p224 = por %p222, %p223
      %s226 = sadd.s32 %s225, 1
      %p229 = scmp.eq.s32.totalorder %s23, 1
      %p230 = scmp.ne.s32.totalorder %s225, %s227
      %p231 = scmp.eq.s32.totalorder %s23, 0
      %p232 = por %p230, %p231
      %p233 = scmp.ne.s32.totalorder %s225, %s227
      %p234 = scmp.eq.s32.totalorder %s28, 1
      %p235 = por %p233, %p234
      %p236 = scmp.ne.s32.totalorder %s227, %s228
      %p237 = scmp.eq.s32.totalorder %s28, 0
      %p238 = por %p236, %p237
      %p239 = scmp.ne.s32.totalorder %s227, %s228
      %p240 = scmp.eq.s32.totalorder %s29, 1
      %p241 = por %p239, %p240
      %p243 = scmp.ne.s32.totalorder %s228, %s242
      %p244 = scmp.eq.s32.totalorder %s29, 0
      %p245 = por %p243, %p244
      %s247 = sadd.s32 %s246, 1
      %p250 = scmp.eq.s32.totalorder %s23, 1
      %p251 = scmp.ne.s32.totalorder %s246, %s248
      %p252 = scmp.eq.s32.totalorder %s23, 0
      %p253 = por %p251, %p252
      %p254 = scmp.ne.s32.totalorder %s246, %s248
      %p255 = scmp.eq.s32.totalorder %s28, 1
      %p256 = por %p254, %p255
      %p257 = scmp.ne.s32.totalorder %s248, %s249
      %p258 = scmp.eq.s32.totalorder %s28, 0
      %p259 = por %p257, %p258
      %p260 = scmp.ne.s32.totalorder %s248, %s249
      %p261 = scmp.eq.s32.totalorder %s29, 1
      %p262 = por %p260, %p261
      %p264 = scmp.ne.s32.totalorder %s249, %s263
      %p265 = scmp.eq.s32.totalorder %s29, 0
      %p266 = por %p264, %p265
      %s268 = sadd.s32 %s267, 1
      %p271 = scmp.eq.s32.totalorder %s23, 1
      %p272 = scmp.ne.s32.totalorder %s267, %s269
      %p273 = scmp.eq.s32.totalorder %s23, 0
      %p274 = por %p272, %p273
      %p275 = scmp.ne.s32.totalorder %s267, %s269
      %p276 = scmp.eq.s32.totalorder %s28, 1
      %p277 = por %p275, %p276
      %p278 = scmp.ne.s32.totalorder %s269, %s270
      %p279 = scmp.eq.s32.totalorder %s28, 0
      %p280 = por %p278, %p279
      %p281 = scmp.ne.s32.totalorder %s269, %s270
      %p282 = scmp.eq.s32.totalorder %s29, 1
      %p283 = por %p281, %p282
      %p285 = scmp.ne.s32.totalorder %s270, %s284
      %p286 = scmp.eq.s32.totalorder %s29, 0
      %p287 = por %p285, %p286
      %s288 = ssub.s32 %s23, %s30
      %p289 = scmp.eq.s32.totalorder %s288, 0
      %s291 = sadd.s32 %s290, 1
      %s292 = scalar_select %p289, %s290, %s291
      %p295 = pneg %p289
      %p296 = scmp.eq.s32.totalorder %s23, 1
      %p297 = por %p295, %p296
      %p298 = scmp.ne.s32.totalorder %s290, %s293
      %p299 = scmp.eq.s32.totalorder %s23, 0
      %p300 = por %p298, %p299
      %p301 = scmp.ne.s32.totalorder %s290, %s293
      %p302 = scmp.eq.s32.totalorder %s28, 1
      %p303 = por %p301, %p302
      %p304 = scmp.ne.s32.totalorder %s293, %s294
      %p305 = scmp.eq.s32.totalorder %s28, 0
      %p306 = por %p304, %p305
      %p307 = scmp.ne.s32.totalorder %s293, %s294
      %p308 = scmp.eq.s32.totalorder %s29, 1
      %p309 = por %p307, %p308
      %p311 = scmp.ne.s32.totalorder %s294, %s310
      %p312 = scmp.eq.s32.totalorder %s29, 0
      %p313 = por %p311, %p312
      %p314 = scmp.le.s32.totalorder 1, %s23
      %p315 = scmp.lt.s32.totalorder %s23, 3
      %p316 = pnand %p314, %p315
      %p317 = pneg %p316
      // Predicated region
      $region9: #{tpu_custom_call.1} parent=5 // pred_check
        _
      $region10: #{tpu_custom_call.1} parent=5 // pred_check_branch
        %319 = sbr.rel (%p316) target = $region12
      $region11: #{tpu_custom_call.1} parent=5 // pred_region
        %s320 = ssub.s32 %s23, 1
        // Predicated region
        $region13: #{tpu_custom_call.1} parent=11 // pred_check
          %p321 = pneg %p70
        $region14: #{tpu_custom_call.1} parent=11 // pred_check_branch
          %323 = sbr.rel (%p321) target = $region16
        $region15: #{tpu_custom_call.1} parent=11 // pred_region
          _
        $region16: #{tpu_custom_call.1} parent=11 // pred_fallthru
          _
        // Predicated region
        $region17: #{tpu_custom_call.1} parent=11 // pred_check
          %p324 = pneg %p91
        $region18: #{tpu_custom_call.1} parent=11 // pred_check_branch
          %326 = sbr.rel (%p324) target = $region20
        $region19: #{tpu_custom_call.1} parent=11 // pred_region
          _
        $region20: #{tpu_custom_call.1} parent=11 // pred_fallthru
          _
        // Predicated region
        $region21: #{tpu_custom_call.1} parent=11 // pred_check
          %p327 = pneg %p112
        $region22: #{tpu_custom_call.1} parent=11 // pred_check_branch
          %329 = sbr.rel (%p327) target = $region24
        $region23: #{tpu_custom_call.1} parent=11 // pred_region
          _
        $region24: #{tpu_custom_call.1} parent=11 // pred_fallthru
          _
        // Predicated region
        $region25: #{tpu_custom_call.1} parent=11 // pred_check
          %p330 = pneg %p133
        $region26: #{tpu_custom_call.1} parent=11 // pred_check_branch
          %332 = sbr.rel (%p330) target = $region28
        $region27: #{tpu_custom_call.1} parent=11 // pred_region
          _
        $region28: #{tpu_custom_call.1} parent=11 // pred_fallthru
          _
        // Predicated region
        $region29: #{tpu_custom_call.1} parent=11 // pred_check
          %p333 = pneg %p154
        $region30: #{tpu_custom_call.1} parent=11 // pred_check_branch
          %335 = sbr.rel (%p333) target = $region32
        $region31: #{tpu_custom_call.1} parent=11 // pred_region
          _
        $region32: #{tpu_custom_call.1} parent=11 // pred_fallthru
          _
        // Predicated region
        $region33: #{tpu_custom_call.1} parent=11 // pred_check
          %p336 = pneg %p175
        $region34: #{tpu_custom_call.1} parent=11 // pred_check_branch
          %338 = sbr.rel (%p336) target = $region36
        $region35: #{tpu_custom_call.1} parent=11 // pred_region
          %s340 = ssub.s32 1024, 1024
          %341 = vsyncadd [#allocation3], %s340
          %s342 = sshll.u32 [#allocation2], 4
          %s343 = int_to_ptr.vmem [resolvable:$true] %s342
          %348 = dma.hbm_to_vmem [thread:$0]  %s6, 1024, %s343, [#allocation3], 128, 128, 8
        $region36: #{tpu_custom_call.1} parent=11 // pred_fallthru
          _
        // Predicated region
        $region37: #{tpu_custom_call.1} parent=11 // pred_check
          %p349 = pneg %p196
        $region38: #{tpu_custom_call.1} parent=11 // pred_check_branch
          %351 = sbr.rel (%p349) target = $region40
        $region39: #{tpu_custom_call.1} parent=11 // pred_region
          _
        $region40: #{tpu_custom_call.1} parent=11 // pred_fallthru
          _
        // Predicated region
        $region41: #{tpu_custom_call.1} parent=11 // pred_check
          %p352 = pneg %p217
        $region42: #{tpu_custom_call.1} parent=11 // pred_check_branch
          %354 = sbr.rel (%p352) target = $region44
        $region43: #{tpu_custom_call.1} parent=11 // pred_region
          %s356 = ssub.s32 1024, 1024
          %357 = vsyncadd [#allocation6], %s356
          %s358 = sshll.u32 [#allocation5], 4
          %s359 = int_to_ptr.vmem [resolvable:$true] %s358
          %364 = dma.hbm_to_vmem [thread:$0]  %s8, 1024, %s359, [#allocation6], 128, 128, 8
        $region44: #{tpu_custom_call.1} parent=11 // pred_fallthru
          _
        // Predicated region
        $region45: #{tpu_custom_call.1} parent=11 // pred_check
          %p365 = pneg %p238
        $region46: #{tpu_custom_call.1} parent=11 // pred_check_branch
          %367 = sbr.rel (%p365) target = $region48
        $region47: #{tpu_custom_call.1} parent=11 // pred_region
          _
        $region48: #{tpu_custom_call.1} parent=11 // pred_fallthru
          _
        // Predicated region
        $region49: #{tpu_custom_call.1} parent=11 // pred_check
          %p368 = pneg %p259
        $region50: #{tpu_custom_call.1} parent=11 // pred_check_branch
          %370 = sbr.rel (%p368) target = $region52
        $region51: #{tpu_custom_call.1} parent=11 // pred_region
          %s372 = ssub.s32 1024, 1024
          %373 = vsyncadd [#allocation6], %s372
          %s374 = sshll.u32 [#allocation7], 4
          %s375 = int_to_ptr.vmem [resolvable:$true] %s374
          %380 = dma.hbm_to_vmem [thread:$0]  %s10, 1024, %s375, [#allocation6], 128, 128, 8
        $region52: #{tpu_custom_call.1} parent=11 // pred_fallthru
          _
        // Predicated region
        $region53: #{tpu_custom_call.1} parent=11 // pred_check
          %p381 = pneg %p280
        $region54: #{tpu_custom_call.1} parent=11 // pred_check_branch
          %383 = sbr.rel (%p381) target = $region56
        $region55: #{tpu_custom_call.1} parent=11 // pred_region
          _
        $region56: #{tpu_custom_call.1} parent=11 // pred_fallthru
          _
      $region12: #{tpu_custom_call.1} parent=5 // pred_fallthru
        _
      %p384 = scmp.lt.s32.totalorder %s23, 2
      // Predicated region
      $region57: #{tpu_custom_call.1} parent=5 // pred_check
        %p385 = pneg %p384
      $region58: #{tpu_custom_call.1} parent=5 // pred_check_branch
        %387 = sbr.rel (%p385) target = $region60
      $region59: #{tpu_custom_call.1} parent=5 // pred_region
        // Predicated region
        $region61: #{tpu_custom_call.1} parent=59 // pred_check
          %p388 = pneg %p43
        $region62: #{tpu_custom_call.1} parent=59 // pred_check_branch
          %390 = sbr.rel (%p388) target = $region64
        $region63: #{tpu_custom_call.1} parent=59 // pred_region
          %p391 = scmp.lt.s32.totalorder %s23, 1
          %s392 = scalar_select %p391, %s23, 1
          %s393 = smul.addr %s392, 16
          %s394 = smul.addr %s393, 8
          %s395 = scalar_lea.vmem %s0, %s394
        $region64: #{tpu_custom_call.1} parent=59 // pred_fallthru
          _
      $region60: #{tpu_custom_call.1} parent=5 // pred_fallthru
        _
      %p396 = scmp.le.s32.totalorder 1, %s23
      %p397 = scmp.lt.s32.totalorder %s23, 3
      %p398 = pnand %p396, %p397
      %p399 = pneg %p398
      // Predicated region
      $region65: #{tpu_custom_call.1} parent=5 // pred_check
        _
      $region66: #{tpu_custom_call.1} parent=5 // pred_check_branch
        %401 = sbr.rel (%p398) target = $region68
      $region67: #{tpu_custom_call.1} parent=5 // pred_region
        %s402 = ssub.s32 %s23, 1
        // Predicated region
        $region69: #{tpu_custom_call.1} parent=67 // pred_check
          %p403 = pneg %p175
        $region70: #{tpu_custom_call.1} parent=67 // pred_check_branch
          %405 = sbr.rel (%p403) target = $region72
        $region71: #{tpu_custom_call.1} parent=67 // pred_region
          %406 = dma.done [#allocation3], 1024
        $region72: #{tpu_custom_call.1} parent=67 // pred_fallthru
          _
        // Predicated region
        $region73: #{tpu_custom_call.1} parent=67 // pred_check
          %p407 = pneg %p217
        $region74: #{tpu_custom_call.1} parent=67 // pred_check_branch
          %409 = sbr.rel (%p407) target = $region76
        $region75: #{tpu_custom_call.1} parent=67 // pred_region
          %410 = dma.done [#allocation6], 1024
        $region76: #{tpu_custom_call.1} parent=67 // pred_fallthru
          _
        // Predicated region
        $region77: #{tpu_custom_call.1} parent=67 // pred_check
          %p411 = pneg %p259
        $region78: #{tpu_custom_call.1} parent=67 // pred_check_branch
          %413 = sbr.rel (%p411) target = $region80
        $region79: #{tpu_custom_call.1} parent=67 // pred_region
          %414 = dma.done [#allocation6], 1024
        $region80: #{tpu_custom_call.1} parent=67 // pred_fallthru
          _
        %p415 = scmp.lt.s32.totalorder %s28, 1
        %s416 = scalar_select %p415, %s28, 1
        %s417 = smul.addr %s416, 16
        %s418 = smul.addr %s417, 8
        %s419 = scalar_lea.vmem %s0, %s418
        %p420 = pneg %p49
        %p421 = pneg %p46
        %p422 = pneg %p70
        %p423 = pneg %p67
        %p424 = pneg %p91
        %p425 = pneg %p88
        %p426 = pneg %p112
        %p427 = pneg %p109
        %p428 = pneg %p133
        %p429 = pneg %p130
        %p430 = pneg %p154
        %p431 = pneg %p151
        %p432 = pneg %p175
        %p433 = pneg %p172
        %p434 = pneg %p196
        %p435 = pneg %p193
        %p436 = pneg %p217
        %p437 = pneg %p214
        %p438 = pneg %p238
        %p439 = pneg %p235
        %p440 = pneg %p259
        %p441 = pneg %p256
        %p442 = pneg %p280
        %p443 = pneg %p277
        %p444 = pneg %p306
        %p445 = pneg %p303
        %s446 = sand.u32 %s293, 1
        %s447 = scalar_lea.sflag [#allocation4], %s446
        %s448 = sand.u32 %s293, 1
        %s449 = smul.addr %s448, 128
        %s450 = scalar_lea.vmem [#allocation8], %s449
        %p451 = scmp.lt.s32.totalorder %s28, 1
        %s452 = scalar_select %p451, %s28, 1
        %s453 = smul.addr %s452, 16
        %s454 = smul.addr %s453, 8
        %s455 = scalar_lea.vmem %s0, %s454
        %v456 = vld [vmem:[%s455] sm:$0xff]
        %v457 = vld [vmem:[%s455 + $0x8] sm:$0xff]
        %v458 = vld [vmem:[%s455 + $0x10] sm:$0xff]
        %v459 = vld [vmem:[%s455 + $0x18] sm:$0xff]
        %v460 = vld [vmem:[%s455 + $0x20] sm:$0xff]
        %v461 = vld [vmem:[%s455 + $0x28] sm:$0xff]
        %v462 = vld [vmem:[%s455 + $0x30] sm:$0xff]
        %v463 = vld [vmem:[%s455 + $0x38] sm:$0xff]
        %v464 = vld [vmem:[%s455 + $0x40] sm:$0xff]
        %v465 = vld [vmem:[%s455 + $0x48] sm:$0xff]
        %v466 = vld [vmem:[%s455 + $0x50] sm:$0xff]
        %v467 = vld [vmem:[%s455 + $0x58] sm:$0xff]
        %v468 = vld [vmem:[%s455 + $0x60] sm:$0xff]
        %v469 = vld [vmem:[%s455 + $0x68] sm:$0xff]
        %v470 = vld [vmem:[%s455 + $0x70] sm:$0xff]
        %v471 = vld [vmem:[%s455 + $0x78] sm:$0xff]
        %v472 = vadd.f32 %v456, %v457
        %473 = vadd.xlane.f32.xlu0 %v472
        %v474 = vpop.xlane.xlu0 %473
        %v475 = vadd.f32 %v458, %v459
        %476 = vadd.xlane.f32.xlu0 %v475
        %v477 = vpop.xlane.xlu0 %476
        %v478 = vadd.f32 %v460, %v461
        %479 = vadd.xlane.f32.xlu0 %v478
        %v480 = vpop.xlane.xlu0 %479
        %v481 = vadd.f32 %v462, %v463
        %482 = vadd.xlane.f32.xlu0 %v481
        %v483 = vpop.xlane.xlu0 %482
        %v484 = vadd.f32 %v464, %v465
        %485 = vadd.xlane.f32.xlu0 %v484
        %v486 = vpop.xlane.xlu0 %485
        %v487 = vadd.f32 %v466, %v467
        %488 = vadd.xlane.f32.xlu0 %v487
        %v489 = vpop.xlane.xlu0 %488
        %v490 = vadd.f32 %v468, %v469
        %491 = vadd.xlane.f32.xlu0 %v490
        %v492 = vpop.xlane.xlu0 %491
        %v493 = vadd.f32 %v470, %v471
        %494 = vadd.xlane.f32.xlu0 %v493
        %v495 = vpop.xlane.xlu0 %494
        %v496 = vmul.f32 %v456, %v456
        %v497 = vmul.f32 %v457, %v457
        %v498 = vmul.f32 %v458, %v458
        %v499 = vmul.f32 %v459, %v459
        %v500 = vmul.f32 %v460, %v460
        %v501 = vmul.f32 %v461, %v461
        %v502 = vmul.f32 %v462, %v462
        %v503 = vmul.f32 %v463, %v463
        %v504 = vmul.f32 %v464, %v464
        %v505 = vmul.f32 %v465, %v465
        %v506 = vmul.f32 %v466, %v466
        %v507 = vmul.f32 %v467, %v467
        %v508 = vmul.f32 %v468, %v468
        %v509 = vmul.f32 %v469, %v469
        %v510 = vmul.f32 %v470, %v470
        %v511 = vmul.f32 %v471, %v471
        %v512 = vadd.f32 %v496, %v497
        %513 = vadd.xlane.f32.xlu0 %v512
        %v514 = vpop.xlane.xlu0 %513
        %v515 = vadd.f32 %v498, %v499
        %516 = vadd.xlane.f32.xlu0 %v515
        %v517 = vpop.xlane.xlu0 %516
        %v518 = vadd.f32 %v500, %v501
        %519 = vadd.xlane.f32.xlu0 %v518
        %v520 = vpop.xlane.xlu0 %519
        %v521 = vadd.f32 %v502, %v503
        %522 = vadd.xlane.f32.xlu0 %v521
        %v523 = vpop.xlane.xlu0 %522
        %v524 = vadd.f32 %v504, %v505
        %525 = vadd.xlane.f32.xlu0 %v524
        %v526 = vpop.xlane.xlu0 %525
        %v527 = vadd.f32 %v506, %v507
        %528 = vadd.xlane.f32.xlu0 %v527
        %v529 = vpop.xlane.xlu0 %528
        %v530 = vadd.f32 %v508, %v509
        %531 = vadd.xlane.f32.xlu0 %v530
        %v532 = vpop.xlane.xlu0 %531
        %v533 = vadd.f32 %v510, %v511
        %534 = vadd.xlane.f32.xlu0 %v533
        %v535 = vpop.xlane.xlu0 %534
        %v536 = vld [vmem:[%s1] sm:$0xff]
        %v537 = vld [vmem:[%s1 + $0x8] sm:$0xff]
        %v538 = vld [vmem:[%s1 + $0x10] sm:$0xff]
        %v539 = vld [vmem:[%s1 + $0x18] sm:$0xff]
        %v540 = vld [vmem:[%s1 + $0x20] sm:$0xff]
        %v541 = vld [vmem:[%s1 + $0x28] sm:$0xff]
        %v542 = vld [vmem:[%s1 + $0x30] sm:$0xff]
        %v543 = vld [vmem:[%s1 + $0x38] sm:$0xff]
        %vm544 = vcmask 523264
        %v546 = vsel %vm544, %v536, 0
        %v549 = vsel %vm544, %v537, 0
        %v552 = vsel %vm544, %v538, 0
        %v555 = vsel %vm544, %v539, 0
        %v558 = vsel %vm544, %v540, 0
        %v561 = vsel %vm544, %v541, 0
        %v564 = vsel %vm544, %v542, 0
        %v567 = vsel %vm544, %v543, 0
        %569 = vmatprep.subr.mxu0 0.0
        %570 = vmatpush1.msra.mxu0 0.0
        %571 = vmatprep.subr.mxu0 0.0
        %572 = vmatpush1.msra.mxu0 0.0
        %573 = vmatprep.subr.mxu0 0.0
        %574 = vmatpush1.msra.mxu0 0.0
        %575 = vmatprep.subr.mxu0 0.0
        %576 = vmatpush1.msra.mxu0 0.0
        %577 = vmatprep.subr.mxu0 0.0
        %578 = vmatpush1.msra.mxu0 0.0
        %579 = vmatprep.subr.mxu0 0.0
        %580 = vmatpush1.msra.mxu0 0.0
        %581 = vmatprep.subr.mxu0 0.0
        %582 = vmatpush1.msra.mxu0 0.0
        %583 = vmatprep.subr.mxu0 0.0
        %584 = vmatpush1.msra.mxu0 0.0
        %585 = vmatprep.subr.mxu0 0.0
        %586 = vmatpush1.msra.mxu0 %v495
        %587 = vmatprep.subr.mxu0 0.0
        %588 = vmatpush1.msra.mxu0 %v492
        %589 = vmatprep.subr.mxu0 0.0
        %590 = vmatpush1.msra.mxu0 %v489
        %591 = vmatprep.subr.mxu0 0.0
        %592 = vmatpush1.msra.mxu0 %v486
        %593 = vmatprep.subr.mxu0 0.0
        %594 = vmatpush1.msra.mxu0 %v483
        %595 = vmatprep.subr.mxu0 0.0
        %596 = vmatpush1.msra.mxu0 %v480
        %597 = vmatprep.subr.mxu0 0.0
        %598 = vmatpush1.msra.mxu0 %v477
        %599 = vmatprep.subr.mxu0 0.0
        %600 = vmatpush1.msra.mxu0 %v474
        %601 = vmatprep.subr.mxu0 0.0
        %602 = vmatpush2.msra.mxu0 0.0
        %603 = vmatprep.subr.mxu0 0.0
        %604 = vmatpush2.msra.mxu0 0.0
        %605 = vmatprep.subr.mxu0 0.0
        %606 = vmatpush2.msra.mxu0 0.0
        %607 = vmatprep.subr.mxu0 0.0
        %608 = vmatpush2.msra.mxu0 0.0
        %609 = vmatprep.subr.mxu0 0.0
        %610 = vmatpush2.msra.mxu0 0.0
        %611 = vmatprep.subr.mxu0 0.0
        %612 = vmatpush2.msra.mxu0 0.0
        %613 = vmatprep.subr.mxu0 0.0
        %614 = vmatpush2.msra.mxu0 0.0
        %615 = vmatprep.subr.mxu0 0.0
        %616 = vmatpush2.msra.mxu0 0.0
        %617 = vmatprep.subr.mxu0 0.0
        %618 = vmatpush2.msra.mxu0 0.0
        %619 = vmatprep.subr.mxu0 0.0
        %620 = vmatpush2.msra.mxu0 0.0
        %621 = vmatprep.subr.mxu0 0.0
        %622 = vmatpush2.msra.mxu0 0.0
        %623 = vmatprep.subr.mxu0 0.0
        %624 = vmatpush2.msra.mxu0 0.0
        %625 = vmatprep.subr.mxu0 0.0
        %626 = vmatpush2.msra.mxu0 0.0
        %627 = vmatprep.subr.mxu0 0.0
        %628 = vmatpush2.msra.mxu0 0.0
        %629 = vmatprep.subr.mxu0 0.0
        %630 = vmatpush2.msra.mxu0 0.0
        %631 = vmatprep.subr.mxu0 0.0
        %632 = vmatpush2.msra.mxu0 0.0
        %633 = vmatprep.mubr.f32.mxu0 0.0
        %634 = vmatmul.mubr.f32.gmra.mxu0 %v546
        %v635 = vpop.f32.mrf.mxu0
        %v636 = vadd.f32 0.0, %v635
        %v637 = vpop.f32.mrf.mxu0
        %638 = vmatprep.mubr.f32.mxu0 0.0
        %639 = vmatmul.mubr.f32.gmra.mxu0 %v549
        %v640 = vpop.f32.mrf.mxu0
        %v641 = vadd.f32 0.0, %v640
        %v642 = vpop.f32.mrf.mxu0
        %643 = vmatprep.mubr.f32.mxu0 0.0
        %644 = vmatmul.mubr.f32.gmra.mxu0 %v552
        %v645 = vpop.f32.mrf.mxu0
        %v646 = vadd.f32 0.0, %v645
        %v647 = vpop.f32.mrf.mxu0
        %648 = vmatprep.mubr.f32.mxu0 0.0
        %649 = vmatmul.mubr.f32.gmra.mxu0 %v555
        %v650 = vpop.f32.mrf.mxu0
        %v651 = vadd.f32 0.0, %v650
        %v652 = vpop.f32.mrf.mxu0
        %653 = vmatprep.mubr.f32.mxu0 0.0
        %654 = vmatmul.mubr.f32.gmra.mxu0 %v558
        %v655 = vpop.f32.mrf.mxu0
        %v656 = vadd.f32 0.0, %v655
        %v657 = vpop.f32.mrf.mxu0
        %658 = vmatprep.mubr.f32.mxu0 0.0
        %659 = vmatmul.mubr.f32.gmra.mxu0 %v561
        %v660 = vpop.f32.mrf.mxu0
        %v661 = vadd.f32 0.0, %v660
        %v662 = vpop.f32.mrf.mxu0
        %663 = vmatprep.mubr.f32.mxu0 0.0
        %664 = vmatmul.mubr.f32.gmra.mxu0 %v564
        %v665 = vpop.f32.mrf.mxu0
        %v666 = vadd.f32 0.0, %v665
        %v667 = vpop.f32.mrf.mxu0
        %668 = vmatprep.mubr.f32.mxu0 0.0
        %669 = vmatmul.mubr.f32.gmra.mxu0 %v567
        %v670 = vpop.f32.mrf.mxu0
        %v671 = vadd.f32 0.0, %v670
        %v672 = vpop.f32.mrf.mxu0
        %673 = vdwg.mxu0
        %674 = vmatprep.subr.mxu0 0.0
        %675 = vmatpush1.msra.mxu0 0.0
        %676 = vmatprep.subr.mxu0 0.0
        %677 = vmatpush1.msra.mxu0 0.0
        %678 = vmatprep.subr.mxu0 0.0
        %679 = vmatpush1.msra.mxu0 0.0
        %680 = vmatprep.subr.mxu0 0.0
        %681 = vmatpush1.msra.mxu0 0.0
        %682 = vmatprep.subr.mxu0 0.0
        %683 = vmatpush1.msra.mxu0 0.0
        %684 = vmatprep.subr.mxu0 0.0
        %685 = vmatpush1.msra.mxu0 0.0
        %686 = vmatprep.subr.mxu0 0.0
        %687 = vmatpush1.msra.mxu0 0.0
        %688 = vmatprep.subr.mxu0 0.0
        %689 = vmatpush1.msra.mxu0 0.0
        %690 = vmatprep.subr.mxu0 0.0
        %691 = vmatpush1.msra.mxu0 %v535
        %692 = vmatprep.subr.mxu0 0.0
        %693 = vmatpush1.msra.mxu0 %v532
        %694 = vmatprep.subr.mxu0 0.0
        %695 = vmatpush1.msra.mxu0 %v529
        %696 = vmatprep.subr.mxu0 0.0
        %697 = vmatpush1.msra.mxu0 %v526
        %698 = vmatprep.subr.mxu0 0.0
        %699 = vmatpush1.msra.mxu0 %v523
        %700 = vmatprep.subr.mxu0 0.0
        %701 = vmatpush1.msra.mxu0 %v520
        %702 = vmatprep.subr.mxu0 0.0
        %703 = vmatpush1.msra.mxu0 %v517
        %704 = vmatprep.subr.mxu0 0.0
        %705 = vmatpush1.msra.mxu0 %v514
        %706 = vmatprep.subr.mxu0 0.0
        %707 = vmatpush2.msra.mxu0 0.0
        %708 = vmatprep.subr.mxu0 0.0
        %709 = vmatpush2.msra.mxu0 0.0
        %710 = vmatprep.subr.mxu0 0.0
        %711 = vmatpush2.msra.mxu0 0.0
        %712 = vmatprep.subr.mxu0 0.0
        %713 = vmatpush2.msra.mxu0 0.0
        %714 = vmatprep.subr.mxu0 0.0
        %715 = vmatpush2.msra.mxu0 0.0
        %716 = vmatprep.subr.mxu0 0.0
        %717 = vmatpush2.msra.mxu0 0.0
        %718 = vmatprep.subr.mxu0 0.0
        %719 = vmatpush2.msra.mxu0 0.0
        %720 = vmatprep.subr.mxu0 0.0
        %721 = vmatpush2.msra.mxu0 0.0
        %722 = vmatprep.subr.mxu0 0.0
        %723 = vmatpush2.msra.mxu0 0.0
        %724 = vmatprep.subr.mxu0 0.0
        %725 = vmatpush2.msra.mxu0 0.0
        %726 = vmatprep.subr.mxu0 0.0
        %727 = vmatpush2.msra.mxu0 0.0
        %728 = vmatprep.subr.mxu0 0.0
        %729 = vmatpush2.msra.mxu0 0.0
        %730 = vmatprep.subr.mxu0 0.0
        %731 = vmatpush2.msra.mxu0 0.0
        %732 = vmatprep.subr.mxu0 0.0
        %733 = vmatpush2.msra.mxu0 0.0
        %734 = vmatprep.subr.mxu0 0.0
        %735 = vmatpush2.msra.mxu0 0.0
        %736 = vmatprep.subr.mxu0 0.0
        %737 = vmatpush2.msra.mxu0 0.0
        %738 = vmatprep.mubr.f32.mxu0 0.0
        %739 = vmatmul.mubr.f32.gmra.mxu0 %v546
        %v740 = vpop.f32.mrf.mxu0
        %v741 = vadd.f32 0.0, %v740
        %v742 = vpop.f32.mrf.mxu0
        %743 = vmatprep.mubr.f32.mxu0 0.0
        %744 = vmatmul.mubr.f32.gmra.mxu0 %v549
        %v745 = vpop.f32.mrf.mxu0
        %v746 = vadd.f32 0.0, %v745
        %v747 = vpop.f32.mrf.mxu0
        %748 = vmatprep.mubr.f32.mxu0 0.0
        %749 = vmatmul.mubr.f32.gmra.mxu0 %v552
        %v750 = vpop.f32.mrf.mxu0
        %v751 = vadd.f32 0.0, %v750
        %v752 = vpop.f32.mrf.mxu0
        %753 = vmatprep.mubr.f32.mxu0 0.0
        %754 = vmatmul.mubr.f32.gmra.mxu0 %v555
        %v755 = vpop.f32.mrf.mxu0
        %v756 = vadd.f32 0.0, %v755
        %v757 = vpop.f32.mrf.mxu0
        %758 = vmatprep.mubr.f32.mxu0 0.0
        %759 = vmatmul.mubr.f32.gmra.mxu0 %v558
        %v760 = vpop.f32.mrf.mxu0
        %v761 = vadd.f32 0.0, %v760
        %v762 = vpop.f32.mrf.mxu0
        %763 = vmatprep.mubr.f32.mxu0 0.0
        %764 = vmatmul.mubr.f32.gmra.mxu0 %v561
        %v765 = vpop.f32.mrf.mxu0
        %v766 = vadd.f32 0.0, %v765
        %v767 = vpop.f32.mrf.mxu0
        %768 = vmatprep.mubr.f32.mxu0 0.0
        %769 = vmatmul.mubr.f32.gmra.mxu0 %v564
        %v770 = vpop.f32.mrf.mxu0
        %v771 = vadd.f32 0.0, %v770
        %v772 = vpop.f32.mrf.mxu0
        %773 = vmatprep.mubr.f32.mxu0 0.0
        %774 = vmatmul.mubr.f32.gmra.mxu0 %v567
        %v775 = vpop.f32.mrf.mxu0
        %v776 = vadd.f32 0.0, %v775
        %v777 = vpop.f32.mrf.mxu0
        %778 = vdwg.mxu0
        %v779 = vmul.f32 %v636, 0.001953125
        %v780 = vmul.f32 %v641, 0.001953125
        %v781 = vmul.f32 %v646, 0.001953125
        %v782 = vmul.f32 %v651, 0.001953125
        %v783 = vmul.f32 %v656, 0.001953125
        %v784 = vmul.f32 %v661, 0.001953125
        %v785 = vmul.f32 %v666, 0.001953125
        %v786 = vmul.f32 %v671, 0.001953125
        %v787 = vmul.f32 %v741, 0.001953125
        %v788 = vmul.f32 %v746, 0.001953125
        %v789 = vmul.f32 %v751, 0.001953125
        %v790 = vmul.f32 %v756, 0.001953125
        %v791 = vmul.f32 %v761, 0.001953125
        %v792 = vmul.f32 %v766, 0.001953125
        %v793 = vmul.f32 %v771, 0.001953125
        %v794 = vmul.f32 %v776, 0.001953125
        %v795 = vmul.f32 %v779, %v779
        %v796 = vmul.f32 %v780, %v780
        %v797 = vmul.f32 %v781, %v781
        %v798 = vmul.f32 %v782, %v782
        %v799 = vmul.f32 %v783, %v783
        %v800 = vmul.f32 %v784, %v784
        %v801 = vmul.f32 %v785, %v785
        %v802 = vmul.f32 %v786, %v786
        %v803 = vsub.f32 %v787, %v795
        %v804 = vsub.f32 %v788, %v796
        %v805 = vsub.f32 %v789, %v797
        %v806 = vsub.f32 %v790, %v798
        %v807 = vsub.f32 %v791, %v799
        %v808 = vsub.f32 %v792, %v800
        %v809 = vsub.f32 %v793, %v801
        %v810 = vsub.f32 %v794, %v802
        %v811 = vadd.f32 %v803, 1e-06
        %v812 = vadd.f32 %v804, 1e-06
        %v813 = vadd.f32 %v805, 1e-06
        %v814 = vadd.f32 %v806, 1e-06
        %v815 = vadd.f32 %v807, 1e-06
        %v816 = vadd.f32 %v808, 1e-06
        %v817 = vadd.f32 %v809, 1e-06
        %v818 = vadd.f32 %v810, 1e-06
        %v819 = vrsqrt.pop %v811
        %v820 = vrsqrt.pop %v812
        %v821 = vrsqrt.pop %v813
        %v822 = vrsqrt.pop %v814
        %v823 = vrsqrt.pop %v815
        %v824 = vrsqrt.pop %v816
        %v825 = vrsqrt.pop %v817
        %v826 = vrsqrt.pop %v818
        %828 = vset.pattern.permute.xlu0 0
        %829 = vperm.xlu0 %828, %v779
        %v830 = vpop.permute.xlu0 %829
        %833 = vset.pattern.permute.xlu0 0
        %834 = vperm.xlu0 %833, %v780
        %v835 = vpop.permute.xlu0 %834
        %838 = vset.pattern.permute.xlu0 0
        %839 = vperm.xlu0 %838, %v781
        %v840 = vpop.permute.xlu0 %839
        %843 = vset.pattern.permute.xlu0 0
        %844 = vperm.xlu0 %843, %v782
        %v845 = vpop.permute.xlu0 %844
        %848 = vset.pattern.permute.xlu0 0
        %849 = vperm.xlu0 %848, %v783
        %v850 = vpop.permute.xlu0 %849
        %853 = vset.pattern.permute.xlu0 0
        %854 = vperm.xlu0 %853, %v784
        %v855 = vpop.permute.xlu0 %854
        %858 = vset.pattern.permute.xlu0 0
        %859 = vperm.xlu0 %858, %v785
        %v860 = vpop.permute.xlu0 %859
        %863 = vset.pattern.permute.xlu0 0
        %864 = vperm.xlu0 %863, %v786
        %v865 = vpop.permute.xlu0 %864
        %v867 = vsub.f32 %v456, %v830
        %v868 = vsub.f32 %v457, %v830
        %v869 = vsub.f32 %v458, %v835
        %v870 = vsub.f32 %v459, %v835
        %v871 = vsub.f32 %v460, %v840
        %v872 = vsub.f32 %v461, %v840
        %v873 = vsub.f32 %v462, %v845
        %v874 = vsub.f32 %v463, %v845
        %v875 = vsub.f32 %v464, %v850
        %v876 = vsub.f32 %v465, %v850
        %v877 = vsub.f32 %v466, %v855
        %v878 = vsub.f32 %v467, %v855
        %v879 = vsub.f32 %v468, %v860
        %v880 = vsub.f32 %v469, %v860
        %v881 = vsub.f32 %v470, %v865
        %v882 = vsub.f32 %v471, %v865
        %v883 = vld [vmem:[%s2] sm:$0xff]
        %v884 = vld [vmem:[%s2 + $0x8] sm:$0xff]
        %v885 = vld [vmem:[%s2 + $0x10] sm:$0xff]
        %v886 = vld [vmem:[%s2 + $0x18] sm:$0xff]
        %v887 = vld [vmem:[%s2 + $0x20] sm:$0xff]
        %v888 = vld [vmem:[%s2 + $0x28] sm:$0xff]
        %v889 = vld [vmem:[%s2 + $0x30] sm:$0xff]
        %v890 = vld [vmem:[%s2 + $0x38] sm:$0xff]
        %v891 = vmul.f32 %v819, %v883
        %v892 = vmul.f32 %v820, %v884
        %v893 = vmul.f32 %v821, %v885
        %v894 = vmul.f32 %v822, %v886
        %v895 = vmul.f32 %v823, %v887
        %v896 = vmul.f32 %v824, %v888
        %v897 = vmul.f32 %v825, %v889
        %v898 = vmul.f32 %v826, %v890
        %900 = vset.pattern.permute.xlu0 0
        %901 = vperm.xlu0 %900, %v891
        %v902 = vpop.permute.xlu0 %901
        %905 = vset.pattern.permute.xlu0 0
        %906 = vperm.xlu0 %905, %v892
        %v907 = vpop.permute.xlu0 %906
        %910 = vset.pattern.permute.xlu0 0
        %911 = vperm.xlu0 %910, %v893
        %v912 = vpop.permute.xlu0 %911
        %915 = vset.pattern.permute.xlu0 0
        %916 = vperm.xlu0 %915, %v894
        %v917 = vpop.permute.xlu0 %916
        %920 = vset.pattern.permute.xlu0 0
        %921 = vperm.xlu0 %920, %v895
        %v922 = vpop.permute.xlu0 %921
        %925 = vset.pattern.permute.xlu0 0
        %926 = vperm.xlu0 %925, %v896
        %v927 = vpop.permute.xlu0 %926
        %930 = vset.pattern.permute.xlu0 0
        %931 = vperm.xlu0 %930, %v897
        %v932 = vpop.permute.xlu0 %931
        %935 = vset.pattern.permute.xlu0 0
        %936 = vperm.xlu0 %935, %v898
        %v937 = vpop.permute.xlu0 %936
        %v939 = vmul.f32 %v867, %v902
        %v940 = vmul.f32 %v868, %v902
        %v941 = vmul.f32 %v869, %v907
        %v942 = vmul.f32 %v870, %v907
        %v943 = vmul.f32 %v871, %v912
        %v944 = vmul.f32 %v872, %v912
        %v945 = vmul.f32 %v873, %v917
        %v946 = vmul.f32 %v874, %v917
        %v947 = vmul.f32 %v875, %v922
        %v948 = vmul.f32 %v876, %v922
        %v949 = vmul.f32 %v877, %v927
        %v950 = vmul.f32 %v878, %v927
        %v951 = vmul.f32 %v879, %v932
        %v952 = vmul.f32 %v880, %v932
        %v953 = vmul.f32 %v881, %v937
        %v954 = vmul.f32 %v882, %v937
        %v955 = vld [vmem:[%s3] sm:$0xff]
        %v956 = vld [vmem:[%s3 + $0x8] sm:$0xff]
        %v957 = vld [vmem:[%s3 + $0x10] sm:$0xff]
        %v958 = vld [vmem:[%s3 + $0x18] sm:$0xff]
        %v959 = vld [vmem:[%s3 + $0x20] sm:$0xff]
        %v960 = vld [vmem:[%s3 + $0x28] sm:$0xff]
        %v961 = vld [vmem:[%s3 + $0x30] sm:$0xff]
        %v962 = vld [vmem:[%s3 + $0x38] sm:$0xff]
        %964 = vset.pattern.permute.xlu0 0
        %965 = vperm.xlu0 %964, %v955
        %v966 = vpop.permute.xlu0 %965
        %969 = vset.pattern.permute.xlu0 0
        %970 = vperm.xlu0 %969, %v956
        %v971 = vpop.permute.xlu0 %970
        %974 = vset.pattern.permute.xlu0 0
        %975 = vperm.xlu0 %974, %v957
        %v976 = vpop.permute.xlu0 %975
        %979 = vset.pattern.permute.xlu0 0
        %980 = vperm.xlu0 %979, %v958
        %v981 = vpop.permute.xlu0 %980
        %984 = vset.pattern.permute.xlu0 0
        %985 = vperm.xlu0 %984, %v959
        %v986 = vpop.permute.xlu0 %985
        %989 = vset.pattern.permute.xlu0 0
        %990 = vperm.xlu0 %989, %v960
        %v991 = vpop.permute.xlu0 %990
        %994 = vset.pattern.permute.xlu0 0
        %995 = vperm.xlu0 %994, %v961
        %v996 = vpop.permute.xlu0 %995
        %999 = vset.pattern.permute.xlu0 0
        %1000 = vperm.xlu0 %999, %v962
        %v1001 = vpop.permute.xlu0 %1000
        %v1003 = vadd.f32 %v939, %v966
        %v1004 = vadd.f32 %v940, %v966
        %v1005 = vadd.f32 %v941, %v971
        %v1006 = vadd.f32 %v942, %v971
        %v1007 = vadd.f32 %v943, %v976
        %v1008 = vadd.f32 %v944, %v976
        %v1009 = vadd.f32 %v945, %v981
        %v1010 = vadd.f32 %v946, %v981
        %v1011 = vadd.f32 %v947, %v986
        %v1012 = vadd.f32 %v948, %v986
        %v1013 = vadd.f32 %v949, %v991
        %v1014 = vadd.f32 %v950, %v991
        %v1015 = vadd.f32 %v951, %v996
        %v1016 = vadd.f32 %v952, %v996
        %v1017 = vadd.f32 %v953, %v1001
        %v1018 = vadd.f32 %v954, %v1001
        %v1019 = vld [vmem:[%s4] sm:$0xff]
        %v1020 = vld [vmem:[%s4 + $0x8] sm:$0xff]
        %v1021 = vld [vmem:[%s4 + $0x10] sm:$0xff]
        %v1022 = vld [vmem:[%s4 + $0x18] sm:$0xff]
        %v1023 = vld [vmem:[%s4 + $0x20] sm:$0xff]
        %v1024 = vld [vmem:[%s4 + $0x28] sm:$0xff]
        %v1025 = vld [vmem:[%s4 + $0x30] sm:$0xff]
        %v1026 = vld [vmem:[%s4 + $0x38] sm:$0xff]
        %v1027 = vld [vmem:[%s5] sm:$0xff]
        %v1028 = vld [vmem:[%s5 + $0x8] sm:$0xff]
        %v1029 = vld [vmem:[%s5 + $0x10] sm:$0xff]
        %v1030 = vld [vmem:[%s5 + $0x18] sm:$0xff]
        %v1031 = vld [vmem:[%s5 + $0x20] sm:$0xff]
        %v1032 = vld [vmem:[%s5 + $0x28] sm:$0xff]
        %v1033 = vld [vmem:[%s5 + $0x30] sm:$0xff]
        %v1034 = vld [vmem:[%s5 + $0x38] sm:$0xff]
        %1036 = vset.pattern.permute.xlu0 0
        %1037 = vperm.xlu0 %1036, %v1027
        %v1038 = vpop.permute.xlu0 %1037
        %1041 = vset.pattern.permute.xlu0 0
        %1042 = vperm.xlu0 %1041, %v1028
        %v1043 = vpop.permute.xlu0 %1042
        %1046 = vset.pattern.permute.xlu0 0
        %1047 = vperm.xlu0 %1046, %v1029
        %v1048 = vpop.permute.xlu0 %1047
        %1051 = vset.pattern.permute.xlu0 0
        %1052 = vperm.xlu0 %1051, %v1030
        %v1053 = vpop.permute.xlu0 %1052
        %1056 = vset.pattern.permute.xlu0 0
        %1057 = vperm.xlu0 %1056, %v1031
        %v1058 = vpop.permute.xlu0 %1057
        %1061 = vset.pattern.permute.xlu0 0
        %1062 = vperm.xlu0 %1061, %v1032
        %v1063 = vpop.permute.xlu0 %1062
        %1066 = vset.pattern.permute.xlu0 0
        %1067 = vperm.xlu0 %1066, %v1033
        %v1068 = vpop.permute.xlu0 %1067
        %1071 = vset.pattern.permute.xlu0 0
        %1072 = vperm.xlu0 %1071, %v1034
        %v1073 = vpop.permute.xlu0 %1072
        %v1076 = vsel %vm544, %v1019, 0
        %v1079 = vsel %vm544, %v1020, 0
        %v1082 = vsel %vm544, %v1021, 0
        %v1085 = vsel %vm544, %v1022, 0
        %v1088 = vsel %vm544, %v1023, 0
        %v1091 = vsel %vm544, %v1024, 0
        %v1094 = vsel %vm544, %v1025, 0
        %v1097 = vsel %vm544, %v1026, 0
        %1099 = vmatprep.subr.mxu0 0.0
        %1100 = vmatpush1.msra.mxu0 0.0
        %1101 = vmatprep.subr.mxu0 0.0
        %1102 = vmatpush1.msra.mxu0 0.0
        %1103 = vmatprep.subr.mxu0 0.0
        %1104 = vmatpush1.msra.mxu0 0.0
        %1105 = vmatprep.subr.mxu0 0.0
        %1106 = vmatpush1.msra.mxu0 0.0
        %1107 = vmatprep.subr.mxu0 0.0
        %1108 = vmatpush1.msra.mxu0 0.0
        %1109 = vmatprep.subr.mxu0 0.0
        %1110 = vmatpush1.msra.mxu0 0.0
        %1111 = vmatprep.subr.mxu0 0.0
        %1112 = vmatpush1.msra.mxu0 0.0
        %1113 = vmatprep.subr.mxu0 0.0
        %1114 = vmatpush1.msra.mxu0 0.0
        %1115 = vmatprep.subr.mxu0 %v1018
        %1116 = vmatpush1.msra.mxu0 %v1017
        %1117 = vmatprep.subr.mxu0 %v1016
        %1118 = vmatpush1.msra.mxu0 %v1015
        %1119 = vmatprep.subr.mxu0 %v1014
        %1120 = vmatpush1.msra.mxu0 %v1013
        %1121 = vmatprep.subr.mxu0 %v1012
        %1122 = vmatpush1.msra.mxu0 %v1011
        %1123 = vmatprep.subr.mxu0 %v1010
        %1124 = vmatpush1.msra.mxu0 %v1009
        %1125 = vmatprep.subr.mxu0 %v1008
        %1126 = vmatpush1.msra.mxu0 %v1007
        %1127 = vmatprep.subr.mxu0 %v1006
        %1128 = vmatpush1.msra.mxu0 %v1005
        %1129 = vmatprep.subr.mxu0 %v1004
        %1130 = vmatpush1.msra.mxu0 %v1003
        %1131 = vmatprep.subr.mxu0 0.0
        %1132 = vmatpush2.msra.mxu0 0.0
        %1133 = vmatprep.subr.mxu0 0.0
        %1134 = vmatpush2.msra.mxu0 0.0
        %1135 = vmatprep.subr.mxu0 0.0
        %1136 = vmatpush2.msra.mxu0 0.0
        %1137 = vmatprep.subr.mxu0 0.0
        %1138 = vmatpush2.msra.mxu0 0.0
        %1139 = vmatprep.subr.mxu0 0.0
        %1140 = vmatpush2.msra.mxu0 0.0
        %1141 = vmatprep.subr.mxu0 0.0
        %1142 = vmatpush2.msra.mxu0 0.0
        %1143 = vmatprep.subr.mxu0 0.0
        %1144 = vmatpush2.msra.mxu0 0.0
        %1145 = vmatprep.subr.mxu0 0.0
        %1146 = vmatpush2.msra.mxu0 0.0
        %1147 = vmatprep.subr.mxu0 0.0
        %1148 = vmatpush2.msra.mxu0 0.0
        %1149 = vmatprep.subr.mxu0 0.0
        %1150 = vmatpush2.msra.mxu0 0.0
        %1151 = vmatprep.subr.mxu0 0.0
        %1152 = vmatpush2.msra.mxu0 0.0
        %1153 = vmatprep.subr.mxu0 0.0
        %1154 = vmatpush2.msra.mxu0 0.0
        %1155 = vmatprep.subr.mxu0 0.0
        %1156 = vmatpush2.msra.mxu0 0.0
        %1157 = vmatprep.subr.mxu0 0.0
        %1158 = vmatpush2.msra.mxu0 0.0
        %1159 = vmatprep.subr.mxu0 0.0
        %1160 = vmatpush2.msra.mxu0 0.0
        %1161 = vmatprep.subr.mxu0 0.0
        %1162 = vmatpush2.msra.mxu0 0.0
        %1163 = vmatprep.mubr.f32.mxu0 0.0
        %1164 = vmatmul.mubr.f32.gmra.mxu0 %v1076
        %v1165 = vpop.f32.mrf.mxu0
        %v1166 = vadd.f32 %v1038, %v1165
        %v1167 = vpop.f32.mrf.mxu0
        %v1168 = vadd.f32 %v1038, %v1167
        %1169 = vmatprep.mubr.f32.mxu0 0.0
        %1170 = vmatmul.mubr.f32.gmra.mxu0 %v1079
        %v1171 = vpop.f32.mrf.mxu0
        %v1172 = vadd.f32 %v1043, %v1171
        %v1173 = vpop.f32.mrf.mxu0
        %v1174 = vadd.f32 %v1043, %v1173
        %1175 = vmatprep.mubr.f32.mxu0 0.0
        %1176 = vmatmul.mubr.f32.gmra.mxu0 %v1082
        %v1177 = vpop.f32.mrf.mxu0
        %v1178 = vadd.f32 %v1048, %v1177
        %v1179 = vpop.f32.mrf.mxu0
        %v1180 = vadd.f32 %v1048, %v1179
        %1181 = vmatprep.mubr.f32.mxu0 0.0
        %1182 = vmatmul.mubr.f32.gmra.mxu0 %v1085
        %v1183 = vpop.f32.mrf.mxu0
        %v1184 = vadd.f32 %v1053, %v1183
        %v1185 = vpop.f32.mrf.mxu0
        %v1186 = vadd.f32 %v1053, %v1185
        %1187 = vmatprep.mubr.f32.mxu0 0.0
        %1188 = vmatmul.mubr.f32.gmra.mxu0 %v1088
        %v1189 = vpop.f32.mrf.mxu0
        %v1190 = vadd.f32 %v1058, %v1189
        %v1191 = vpop.f32.mrf.mxu0
        %v1192 = vadd.f32 %v1058, %v1191
        %1193 = vmatprep.mubr.f32.mxu0 0.0
        %1194 = vmatmul.mubr.f32.gmra.mxu0 %v1091
        %v1195 = vpop.f32.mrf.mxu0
        %v1196 = vadd.f32 %v1063, %v1195
        %v1197 = vpop.f32.mrf.mxu0
        %v1198 = vadd.f32 %v1063, %v1197
        %1199 = vmatprep.mubr.f32.mxu0 0.0
        %1200 = vmatmul.mubr.f32.gmra.mxu0 %v1094
        %v1201 = vpop.f32.mrf.mxu0
        %v1202 = vadd.f32 %v1068, %v1201
        %v1203 = vpop.f32.mrf.mxu0
        %v1204 = vadd.f32 %v1068, %v1203
        %1205 = vmatprep.mubr.f32.mxu0 0.0
        %1206 = vmatmul.mubr.f32.gmra.mxu0 %v1097
        %v1207 = vpop.f32.mrf.mxu0
        %v1208 = vadd.f32 %v1073, %v1207
        %v1209 = vpop.f32.mrf.mxu0
        %v1210 = vadd.f32 %v1073, %v1209
        %1211 = vdwg.mxu0
        %v1212 = vld [vmem:[#allocation2] sm:$0xff]
        %v1213 = vld [vmem:[#allocation2 + $0x8] sm:$0xff]
        %v1214 = vld [vmem:[#allocation2 + $0x10] sm:$0xff]
        %v1215 = vld [vmem:[#allocation2 + $0x18] sm:$0xff]
        %v1216 = vld [vmem:[#allocation2 + $0x20] sm:$0xff]
        %v1217 = vld [vmem:[#allocation2 + $0x28] sm:$0xff]
        %v1218 = vld [vmem:[#allocation2 + $0x30] sm:$0xff]
        %v1219 = vld [vmem:[#allocation2 + $0x38] sm:$0xff]
        %v1220 = vld [vmem:[%s7] sm:$0xff]
        %v1221 = vld [vmem:[%s7 + $0x8] sm:$0xff]
        %v1222 = vld [vmem:[%s7 + $0x10] sm:$0xff]
        %v1223 = vld [vmem:[%s7 + $0x18] sm:$0xff]
        %v1224 = vld [vmem:[%s7 + $0x20] sm:$0xff]
        %v1225 = vld [vmem:[%s7 + $0x28] sm:$0xff]
        %v1226 = vld [vmem:[%s7 + $0x30] sm:$0xff]
        %v1227 = vld [vmem:[%s7 + $0x38] sm:$0xff]
        %1229 = vset.pattern.permute.xlu0 0
        %1230 = vperm.xlu0 %1229, %v1220
        %v1231 = vpop.permute.xlu0 %1230
        %1234 = vset.pattern.permute.xlu0 0
        %1235 = vperm.xlu0 %1234, %v1221
        %v1236 = vpop.permute.xlu0 %1235
        %1239 = vset.pattern.permute.xlu0 0
        %1240 = vperm.xlu0 %1239, %v1222
        %v1241 = vpop.permute.xlu0 %1240
        %1244 = vset.pattern.permute.xlu0 0
        %1245 = vperm.xlu0 %1244, %v1223
        %v1246 = vpop.permute.xlu0 %1245
        %1249 = vset.pattern.permute.xlu0 0
        %1250 = vperm.xlu0 %1249, %v1224
        %v1251 = vpop.permute.xlu0 %1250
        %1254 = vset.pattern.permute.xlu0 0
        %1255 = vperm.xlu0 %1254, %v1225
        %v1256 = vpop.permute.xlu0 %1255
        %1259 = vset.pattern.permute.xlu0 0
        %1260 = vperm.xlu0 %1259, %v1226
        %v1261 = vpop.permute.xlu0 %1260
        %1264 = vset.pattern.permute.xlu0 0
        %1265 = vperm.xlu0 %1264, %v1227
        %v1266 = vpop.permute.xlu0 %1265
        %v1269 = vsel %vm544, %v1212, 0
        %v1272 = vsel %vm544, %v1213, 0
        %v1275 = vsel %vm544, %v1214, 0
        %v1278 = vsel %vm544, %v1215, 0
        %v1281 = vsel %vm544, %v1216, 0
        %v1284 = vsel %vm544, %v1217, 0
        %v1287 = vsel %vm544, %v1218, 0
        %v1290 = vsel %vm544, %v1219, 0
        %1292 = vmatprep.subr.mxu0 0.0
        %1293 = vmatpush1.msra.mxu0 0.0
        %1294 = vmatprep.subr.mxu0 0.0
        %1295 = vmatpush1.msra.mxu0 0.0
        %1296 = vmatprep.subr.mxu0 0.0
        %1297 = vmatpush1.msra.mxu0 0.0
        %1298 = vmatprep.subr.mxu0 0.0
        %1299 = vmatpush1.msra.mxu0 0.0
        %1300 = vmatprep.subr.mxu0 0.0
        %1301 = vmatpush1.msra.mxu0 0.0
        %1302 = vmatprep.subr.mxu0 0.0
        %1303 = vmatpush1.msra.mxu0 0.0
        %1304 = vmatprep.subr.mxu0 0.0
        %1305 = vmatpush1.msra.mxu0 0.0
        %1306 = vmatprep.subr.mxu0 0.0
        %1307 = vmatpush1.msra.mxu0 0.0
        %1308 = vmatprep.subr.mxu0 %v1018
        %1309 = vmatpush1.msra.mxu0 %v1017
        %1310 = vmatprep.subr.mxu0 %v1016
        %1311 = vmatpush1.msra.mxu0 %v1015
        %1312 = vmatprep.subr.mxu0 %v1014
        %1313 = vmatpush1.msra.mxu0 %v1013
        %1314 = vmatprep.subr.mxu0 %v1012
        %1315 = vmatpush1.msra.mxu0 %v1011
        %1316 = vmatprep.subr.mxu0 %v1010
        %1317 = vmatpush1.msra.mxu0 %v1009
        %1318 = vmatprep.subr.mxu0 %v1008
        %1319 = vmatpush1.msra.mxu0 %v1007
        %1320 = vmatprep.subr.mxu0 %v1006
        %1321 = vmatpush1.msra.mxu0 %v1005
        %1322 = vmatprep.subr.mxu0 %v1004
        %1323 = vmatpush1.msra.mxu0 %v1003
        %1324 = vmatprep.subr.mxu0 0.0
        %1325 = vmatpush2.msra.mxu0 0.0
        %1326 = vmatprep.subr.mxu0 0.0
        %1327 = vmatpush2.msra.mxu0 0.0
        %1328 = vmatprep.subr.mxu0 0.0
        %1329 = vmatpush2.msra.mxu0 0.0
        %1330 = vmatprep.subr.mxu0 0.0
        %1331 = vmatpush2.msra.mxu0 0.0
        %1332 = vmatprep.subr.mxu0 0.0
        %1333 = vmatpush2.msra.mxu0 0.0
        %1334 = vmatprep.subr.mxu0 0.0
        %1335 = vmatpush2.msra.mxu0 0.0
        %1336 = vmatprep.subr.mxu0 0.0
        %1337 = vmatpush2.msra.mxu0 0.0
        %1338 = vmatprep.subr.mxu0 0.0
        %1339 = vmatpush2.msra.mxu0 0.0
        %1340 = vmatprep.subr.mxu0 0.0
        %1341 = vmatpush2.msra.mxu0 0.0
        %1342 = vmatprep.subr.mxu0 0.0
        %1343 = vmatpush2.msra.mxu0 0.0
        %1344 = vmatprep.subr.mxu0 0.0
        %1345 = vmatpush2.msra.mxu0 0.0
        %1346 = vmatprep.subr.mxu0 0.0
        %1347 = vmatpush2.msra.mxu0 0.0
        %1348 = vmatprep.subr.mxu0 0.0
        %1349 = vmatpush2.msra.mxu0 0.0
        %1350 = vmatprep.subr.mxu0 0.0
        %1351 = vmatpush2.msra.mxu0 0.0
        %1352 = vmatprep.subr.mxu0 0.0
        %1353 = vmatpush2.msra.mxu0 0.0
        %1354 = vmatprep.subr.mxu0 0.0
        %1355 = vmatpush2.msra.mxu0 0.0
        %1356 = vmatprep.mubr.f32.mxu0 0.0
        %1357 = vmatmul.mubr.f32.gmra.mxu0 %v1269
        %v1358 = vpop.f32.mrf.mxu0
        %v1359 = vadd.f32 %v1231, %v1358
        %v1360 = vpop.f32.mrf.mxu0
        %v1361 = vadd.f32 %v1231, %v1360
        %1362 = vmatprep.mubr.f32.mxu0 0.0
        %1363 = vmatmul.mubr.f32.gmra.mxu0 %v1272
        %v1364 = vpop.f32.mrf.mxu0
        %v1365 = vadd.f32 %v1236, %v1364
        %v1366 = vpop.f32.mrf.mxu0
        %v1367 = vadd.f32 %v1236, %v1366
        %1368 = vmatprep.mubr.f32.mxu0 0.0
        %1369 = vmatmul.mubr.f32.gmra.mxu0 %v1275
        %v1370 = vpop.f32.mrf.mxu0
        %v1371 = vadd.f32 %v1241, %v1370
        %v1372 = vpop.f32.mrf.mxu0
        %v1373 = vadd.f32 %v1241, %v1372
        %1374 = vmatprep.mubr.f32.mxu0 0.0
        %1375 = vmatmul.mubr.f32.gmra.mxu0 %v1278
        %v1376 = vpop.f32.mrf.mxu0
        %v1377 = vadd.f32 %v1246, %v1376
        %v1378 = vpop.f32.mrf.mxu0
        %v1379 = vadd.f32 %v1246, %v1378
        %1380 = vmatprep.mubr.f32.mxu0 0.0
        %1381 = vmatmul.mubr.f32.gmra.mxu0 %v1281
        %v1382 = vpop.f32.mrf.mxu0
        %v1383 = vadd.f32 %v1251, %v1382
        %v1384 = vpop.f32.mrf.mxu0
        %v1385 = vadd.f32 %v1251, %v1384
        %1386 = vmatprep.mubr.f32.mxu0 0.0
        %1387 = vmatmul.mubr.f32.gmra.mxu0 %v1284
        %v1388 = vpop.f32.mrf.mxu0
        %v1389 = vadd.f32 %v1256, %v1388
        %v1390 = vpop.f32.mrf.mxu0
        %v1391 = vadd.f32 %v1256, %v1390
        %1392 = vmatprep.mubr.f32.mxu0 0.0
        %1393 = vmatmul.mubr.f32.gmra.mxu0 %v1287
        %v1394 = vpop.f32.mrf.mxu0
        %v1395 = vadd.f32 %v1261, %v1394
        %v1396 = vpop.f32.mrf.mxu0
        %v1397 = vadd.f32 %v1261, %v1396
        %1398 = vmatprep.mubr.f32.mxu0 0.0
        %1399 = vmatmul.mubr.f32.gmra.mxu0 %v1290
        %v1400 = vpop.f32.mrf.mxu0
        %v1401 = vadd.f32 %v1266, %v1400
        %v1402 = vpop.f32.mrf.mxu0
        %v1403 = vadd.f32 %v1266, %v1402
        %1404 = vdwg.mxu0
        %v1405 = vld [vmem:[#allocation5] sm:$0xff]
        %v1406 = vld [vmem:[#allocation5 + $0x8] sm:$0xff]
        %v1407 = vld [vmem:[#allocation5 + $0x10] sm:$0xff]
        %v1408 = vld [vmem:[#allocation5 + $0x18] sm:$0xff]
        %v1409 = vld [vmem:[#allocation5 + $0x20] sm:$0xff]
        %v1410 = vld [vmem:[#allocation5 + $0x28] sm:$0xff]
        %v1411 = vld [vmem:[#allocation5 + $0x30] sm:$0xff]
        %v1412 = vld [vmem:[#allocation5 + $0x38] sm:$0xff]
        %v1413 = vld [vmem:[%s9] sm:$0xff]
        %v1414 = vld [vmem:[%s9 + $0x8] sm:$0xff]
        %v1415 = vld [vmem:[%s9 + $0x10] sm:$0xff]
        %v1416 = vld [vmem:[%s9 + $0x18] sm:$0xff]
        %v1417 = vld [vmem:[%s9 + $0x20] sm:$0xff]
        %v1418 = vld [vmem:[%s9 + $0x28] sm:$0xff]
        %v1419 = vld [vmem:[%s9 + $0x30] sm:$0xff]
        %v1420 = vld [vmem:[%s9 + $0x38] sm:$0xff]
        %1422 = vset.pattern.permute.xlu0 0
        %1423 = vperm.xlu0 %1422, %v1413
        %v1424 = vpop.permute.xlu0 %1423
        %1427 = vset.pattern.permute.xlu0 0
        %1428 = vperm.xlu0 %1427, %v1414
        %v1429 = vpop.permute.xlu0 %1428
        %1432 = vset.pattern.permute.xlu0 0
        %1433 = vperm.xlu0 %1432, %v1415
        %v1434 = vpop.permute.xlu0 %1433
        %1437 = vset.pattern.permute.xlu0 0
        %1438 = vperm.xlu0 %1437, %v1416
        %v1439 = vpop.permute.xlu0 %1438
        %1442 = vset.pattern.permute.xlu0 0
        %1443 = vperm.xlu0 %1442, %v1417
        %v1444 = vpop.permute.xlu0 %1443
        %1447 = vset.pattern.permute.xlu0 0
        %1448 = vperm.xlu0 %1447, %v1418
        %v1449 = vpop.permute.xlu0 %1448
        %1452 = vset.pattern.permute.xlu0 0
        %1453 = vperm.xlu0 %1452, %v1419
        %v1454 = vpop.permute.xlu0 %1453
        %1457 = vset.pattern.permute.xlu0 0
        %1458 = vperm.xlu0 %1457, %v1420
        %v1459 = vpop.permute.xlu0 %1458
        %v1462 = vsel %vm544, %v1405, 0
        %v1465 = vsel %vm544, %v1406, 0
        %v1468 = vsel %vm544, %v1407, 0
        %v1471 = vsel %vm544, %v1408, 0
        %v1474 = vsel %vm544, %v1409, 0
        %v1477 = vsel %vm544, %v1410, 0
        %v1480 = vsel %vm544, %v1411, 0
        %v1483 = vsel %vm544, %v1412, 0
        %1485 = vmatprep.subr.mxu0 0.0
        %1486 = vmatpush1.msra.mxu0 0.0
        %1487 = vmatprep.subr.mxu0 0.0
        %1488 = vmatpush1.msra.mxu0 0.0
        %1489 = vmatprep.subr.mxu0 0.0
        %1490 = vmatpush1.msra.mxu0 0.0
        %1491 = vmatprep.subr.mxu0 0.0
        %1492 = vmatpush1.msra.mxu0 0.0
        %1493 = vmatprep.subr.mxu0 0.0
        %1494 = vmatpush1.msra.mxu0 0.0
        %1495 = vmatprep.subr.mxu0 0.0
        %1496 = vmatpush1.msra.mxu0 0.0
        %1497 = vmatprep.subr.mxu0 0.0
        %1498 = vmatpush1.msra.mxu0 0.0
        %1499 = vmatprep.subr.mxu0 0.0
        %1500 = vmatpush1.msra.mxu0 0.0
        %1501 = vmatprep.subr.mxu0 %v1018
        %1502 = vmatpush1.msra.mxu0 %v1017
        %1503 = vmatprep.subr.mxu0 %v1016
        %1504 = vmatpush1.msra.mxu0 %v1015
        %1505 = vmatprep.subr.mxu0 %v1014
        %1506 = vmatpush1.msra.mxu0 %v1013
        %1507 = vmatprep.subr.mxu0 %v1012
        %1508 = vmatpush1.msra.mxu0 %v1011
        %1509 = vmatprep.subr.mxu0 %v1010
        %1510 = vmatpush1.msra.mxu0 %v1009
        %1511 = vmatprep.subr.mxu0 %v1008
        %1512 = vmatpush1.msra.mxu0 %v1007
        %1513 = vmatprep.subr.mxu0 %v1006
        %1514 = vmatpush1.msra.mxu0 %v1005
        %1515 = vmatprep.subr.mxu0 %v1004
        %1516 = vmatpush1.msra.mxu0 %v1003
        %1517 = vmatprep.subr.mxu0 0.0
        %1518 = vmatpush2.msra.mxu0 0.0
        %1519 = vmatprep.subr.mxu0 0.0
        %1520 = vmatpush2.msra.mxu0 0.0
        %1521 = vmatprep.subr.mxu0 0.0
        %1522 = vmatpush2.msra.mxu0 0.0
        %1523 = vmatprep.subr.mxu0 0.0
        %1524 = vmatpush2.msra.mxu0 0.0
        %1525 = vmatprep.subr.mxu0 0.0
        %1526 = vmatpush2.msra.mxu0 0.0
        %1527 = vmatprep.subr.mxu0 0.0
        %1528 = vmatpush2.msra.mxu0 0.0
        %1529 = vmatprep.subr.mxu0 0.0
        %1530 = vmatpush2.msra.mxu0 0.0
        %1531 = vmatprep.subr.mxu0 0.0
        %1532 = vmatpush2.msra.mxu0 0.0
        %1533 = vmatprep.subr.mxu0 0.0
        %1534 = vmatpush2.msra.mxu0 0.0
        %1535 = vmatprep.subr.mxu0 0.0
        %1536 = vmatpush2.msra.mxu0 0.0
        %1537 = vmatprep.subr.mxu0 0.0
        %1538 = vmatpush2.msra.mxu0 0.0
        %1539 = vmatprep.subr.mxu0 0.0
        %1540 = vmatpush2.msra.mxu0 0.0
        %1541 = vmatprep.subr.mxu0 0.0
        %1542 = vmatpush2.msra.mxu0 0.0
        %1543 = vmatprep.subr.mxu0 0.0
        %1544 = vmatpush2.msra.mxu0 0.0
        %1545 = vmatprep.subr.mxu0 0.0
        %1546 = vmatpush2.msra.mxu0 0.0
        %1547 = vmatprep.subr.mxu0 0.0
        %1548 = vmatpush2.msra.mxu0 0.0
        %1549 = vmatprep.mubr.f32.mxu0 0.0
        %1550 = vmatmul.mubr.f32.gmra.mxu0 %v1462
        %v1551 = vpop.f32.mrf.mxu0
        %v1552 = vadd.f32 %v1424, %v1551
        %v1553 = vpop.f32.mrf.mxu0
        %v1554 = vadd.f32 %v1424, %v1553
        %1555 = vmatprep.mubr.f32.mxu0 0.0
        %1556 = vmatmul.mubr.f32.gmra.mxu0 %v1465
        %v1557 = vpop.f32.mrf.mxu0
        %v1558 = vadd.f32 %v1429, %v1557
        %v1559 = vpop.f32.mrf.mxu0
        %v1560 = vadd.f32 %v1429, %v1559
        %1561 = vmatprep.mubr.f32.mxu0 0.0
        %1562 = vmatmul.mubr.f32.gmra.mxu0 %v1468
        %v1563 = vpop.f32.mrf.mxu0
        %v1564 = vadd.f32 %v1434, %v1563
        %v1565 = vpop.f32.mrf.mxu0
        %v1566 = vadd.f32 %v1434, %v1565
        %1567 = vmatprep.mubr.f32.mxu0 0.0
        %1568 = vmatmul.mubr.f32.gmra.mxu0 %v1471
        %v1569 = vpop.f32.mrf.mxu0
        %v1570 = vadd.f32 %v1439, %v1569
        %v1571 = vpop.f32.mrf.mxu0
        %v1572 = vadd.f32 %v1439, %v1571
        %1573 = vmatprep.mubr.f32.mxu0 0.0
        %1574 = vmatmul.mubr.f32.gmra.mxu0 %v1474
        %v1575 = vpop.f32.mrf.mxu0
        %v1576 = vadd.f32 %v1444, %v1575
        %v1577 = vpop.f32.mrf.mxu0
        %v1578 = vadd.f32 %v1444, %v1577
        %1579 = vmatprep.mubr.f32.mxu0 0.0
        %1580 = vmatmul.mubr.f32.gmra.mxu0 %v1477
        %v1581 = vpop.f32.mrf.mxu0
        %v1582 = vadd.f32 %v1449, %v1581
        %v1583 = vpop.f32.mrf.mxu0
        %v1584 = vadd.f32 %v1449, %v1583
        %1585 = vmatprep.mubr.f32.mxu0 0.0
        %1586 = vmatmul.mubr.f32.gmra.mxu0 %v1480
        %v1587 = vpop.f32.mrf.mxu0
        %v1588 = vadd.f32 %v1454, %v1587
        %v1589 = vpop.f32.mrf.mxu0
        %v1590 = vadd.f32 %v1454, %v1589
        %1591 = vmatprep.mubr.f32.mxu0 0.0
        %1592 = vmatmul.mubr.f32.gmra.mxu0 %v1483
        %v1593 = vpop.f32.mrf.mxu0
        %v1594 = vadd.f32 %v1459, %v1593
        %v1595 = vpop.f32.mrf.mxu0
        %v1596 = vadd.f32 %v1459, %v1595
        %1597 = vdwg.mxu0
        %v1598 = vmul.f32 %v1166, 0.125
        %v1599 = vmul.f32 %v1168, 0.125
        %v1600 = vmul.f32 %v1172, 0.125
        %v1601 = vmul.f32 %v1174, 0.125
        %v1602 = vmul.f32 %v1178, 0.125
        %v1603 = vmul.f32 %v1180, 0.125
        %v1604 = vmul.f32 %v1184, 0.125
        %v1605 = vmul.f32 %v1186, 0.125
        %v1606 = vmul.f32 %v1190, 0.125
        %v1607 = vmul.f32 %v1192, 0.125
        %v1608 = vmul.f32 %v1196, 0.125
        %v1609 = vmul.f32 %v1198, 0.125
        %v1610 = vmul.f32 %v1202, 0.125
        %v1611 = vmul.f32 %v1204, 0.125
        %v1612 = vmul.f32 %v1208, 0.125
        %v1613 = vmul.f32 %v1210, 0.125
        %1614 = vxpose.xlu0.b32.start [1/16] %v1598, 128
        %1615 = vxpose.xlu0.b32.cont [2/16] %v1600, 128
        %1616 = vxpose.xlu0.b32.cont [3/16] %v1602, 128
        %1617 = vxpose.xlu0.b32.cont [4/16] %v1604, 128
        %1618 = vxpose.xlu0.b32.cont [5/16] %v1606, 128
        %1619 = vxpose.xlu0.b32.cont [6/16] %v1608, 128
        %1620 = vxpose.xlu0.b32.cont [7/16] %v1610, 128
        %1621 = vxpose.xlu0.b32.cont [8/16] %v1612, 128
        %1622 = vxpose.xlu0.b32.cont [9/16] 0.0, 128
        %1623 = vxpose.xlu0.b32.cont [10/16] 0.0, 128
        %1624 = vxpose.xlu0.b32.cont [11/16] 0.0, 128
        %1625 = vxpose.xlu0.b32.cont [12/16] 0.0, 128
        %1626 = vxpose.xlu0.b32.cont [13/16] 0.0, 128
        %1627 = vxpose.xlu0.b32.cont [14/16] 0.0, 128
        %1628 = vxpose.xlu0.b32.cont [15/16] 0.0, 128
        %1629 = vxpose.xlu0.b32.end [16/16] 0.0, 128
        %v1630 = vpop.trf.xlu0
        %v1631 = vpop.trf.xlu0
        %v1632 = vpop.trf.xlu0
        %v1633 = vpop.trf.xlu0
        %v1634 = vpop.trf.xlu0
        %v1635 = vpop.trf.xlu0
        %v1636 = vpop.trf.xlu0
        %v1637 = vpop.trf.xlu0
        %v1638 = vpop.trf.xlu0
        %v1639 = vpop.trf.xlu0
        %v1640 = vpop.trf.xlu0
        %v1641 = vpop.trf.xlu0
        %v1642 = vpop.trf.xlu0
        %v1643 = vpop.trf.xlu0
        %v1644 = vpop.trf.xlu0
        %v1645 = vpop.trf.xlu0
        %1646 = vxpose.xlu0.b32.start [1/16] %v1599, 128
        %1647 = vxpose.xlu0.b32.cont [2/16] %v1601, 128
        %1648 = vxpose.xlu0.b32.cont [3/16] %v1603, 128
        %1649 = vxpose.xlu0.b32.cont [4/16] %v1605, 128
        %1650 = vxpose.xlu0.b32.cont [5/16] %v1607, 128
        %1651 = vxpose.xlu0.b32.cont [6/16] %v1609, 128
        %1652 = vxpose.xlu0.b32.cont [7/16] %v1611, 128
        %1653 = vxpose.xlu0.b32.cont [8/16] %v1613, 128
        %1654 = vxpose.xlu0.b32.cont [9/16] 0.0, 128
        %1655 = vxpose.xlu0.b32.cont [10/16] 0.0, 128
        %1656 = vxpose.xlu0.b32.cont [11/16] 0.0, 128
        %1657 = vxpose.xlu0.b32.cont [12/16] 0.0, 128
        %1658 = vxpose.xlu0.b32.cont [13/16] 0.0, 128
        %1659 = vxpose.xlu0.b32.cont [14/16] 0.0, 128
        %1660 = vxpose.xlu0.b32.cont [15/16] 0.0, 128
        %1661 = vxpose.xlu0.b32.end [16/16] 0.0, 128
        %v1662 = vpop.trf.xlu0
        %v1663 = vpop.trf.xlu0
        %v1664 = vpop.trf.xlu0
        %v1665 = vpop.trf.xlu0
        %v1666 = vpop.trf.xlu0
        %v1667 = vpop.trf.xlu0
        %v1668 = vpop.trf.xlu0
        %v1669 = vpop.trf.xlu0
        %v1670 = vpop.trf.xlu0
        %v1671 = vpop.trf.xlu0
        %v1672 = vpop.trf.xlu0
        %v1673 = vpop.trf.xlu0
        %v1674 = vpop.trf.xlu0
        %v1675 = vpop.trf.xlu0
        %v1676 = vpop.trf.xlu0
        %v1677 = vpop.trf.xlu0
        %v1679 = vsel %vm544, %v1630, 0
        %v1682 = vsel %vm544, %v1631, 0
        %v1685 = vsel %vm544, %v1632, 0
        %v1688 = vsel %vm544, %v1633, 0
        %v1691 = vsel %vm544, %v1634, 0
        %v1694 = vsel %vm544, %v1635, 0
        %v1697 = vsel %vm544, %v1636, 0
        %v1700 = vsel %vm544, %v1637, 0
        %v1703 = vsel %vm544, %v1638, 0
        %v1706 = vsel %vm544, %v1639, 0
        %v1709 = vsel %vm544, %v1640, 0
        %v1712 = vsel %vm544, %v1641, 0
        %v1715 = vsel %vm544, %v1642, 0
        %v1718 = vsel %vm544, %v1643, 0
        %v1721 = vsel %vm544, %v1644, 0
        %v1724 = vsel %vm544, %v1645, 0
        %v1727 = vsel %vm544, %v1662, 0
        %v1730 = vsel %vm544, %v1663, 0
        %v1733 = vsel %vm544, %v1664, 0
        %v1736 = vsel %vm544, %v1665, 0
        %v1739 = vsel %vm544, %v1666, 0
        %v1742 = vsel %vm544, %v1667, 0
        %v1745 = vsel %vm544, %v1668, 0
        %v1748 = vsel %vm544, %v1669, 0
        %v1751 = vsel %vm544, %v1670, 0
        %v1754 = vsel %vm544, %v1671, 0
        %v1757 = vsel %vm544, %v1672, 0
        %v1760 = vsel %vm544, %v1673, 0
        %v1763 = vsel %vm544, %v1674, 0
        %v1766 = vsel %vm544, %v1675, 0
        %v1769 = vsel %vm544, %v1676, 0
        %v1772 = vsel %vm544, %v1677, 0
        %1774 = vmatprep.subr.mxu0 0.0
        %1775 = vmatpush1.msra.mxu0 0.0
        %1776 = vmatprep.subr.mxu0 0.0
        %1777 = vmatpush1.msra.mxu0 0.0
        %1778 = vmatprep.subr.mxu0 0.0
        %1779 = vmatpush1.msra.mxu0 0.0
        %1780 = vmatprep.subr.mxu0 0.0
        %1781 = vmatpush1.msra.mxu0 0.0
        %1782 = vmatprep.subr.mxu0 0.0
        %1783 = vmatpush1.msra.mxu0 0.0
        %1784 = vmatprep.subr.mxu0 0.0
        %1785 = vmatpush1.msra.mxu0 0.0
        %1786 = vmatprep.subr.mxu0 0.0
        %1787 = vmatpush1.msra.mxu0 0.0
        %1788 = vmatprep.subr.mxu0 0.0
        %1789 = vmatpush1.msra.mxu0 0.0
        %1790 = vmatprep.subr.mxu0 %v1403
        %1791 = vmatpush1.msra.mxu0 %v1401
        %1792 = vmatprep.subr.mxu0 %v1397
        %1793 = vmatpush1.msra.mxu0 %v1395
        %1794 = vmatprep.subr.mxu0 %v1391
        %1795 = vmatpush1.msra.mxu0 %v1389
        %1796 = vmatprep.subr.mxu0 %v1385
        %1797 = vmatpush1.msra.mxu0 %v1383
        %1798 = vmatprep.subr.mxu0 %v1379
        %1799 = vmatpush1.msra.mxu0 %v1377
        %1800 = vmatprep.subr.mxu0 %v1373
        %1801 = vmatpush1.msra.mxu0 %v1371
        %1802 = vmatprep.subr.mxu0 %v1367
        %1803 = vmatpush1.msra.mxu0 %v1365
        %1804 = vmatprep.subr.mxu0 %v1361
        %1805 = vmatpush1.msra.mxu0 %v1359
        %1806 = vmatprep.subr.mxu0 0.0
        %1807 = vmatpush2.msra.mxu0 0.0
        %1808 = vmatprep.subr.mxu0 0.0
        %1809 = vmatpush2.msra.mxu0 0.0
        %1810 = vmatprep.subr.mxu0 0.0
        %1811 = vmatpush2.msra.mxu0 0.0
        %1812 = vmatprep.subr.mxu0 0.0
        %1813 = vmatpush2.msra.mxu0 0.0
        %1814 = vmatprep.subr.mxu0 0.0
        %1815 = vmatpush2.msra.mxu0 0.0
        %1816 = vmatprep.subr.mxu0 0.0
        %1817 = vmatpush2.msra.mxu0 0.0
        %1818 = vmatprep.subr.mxu0 0.0
        %1819 = vmatpush2.msra.mxu0 0.0
        %1820 = vmatprep.subr.mxu0 0.0
        %1821 = vmatpush2.msra.mxu0 0.0
        %1822 = vmatprep.subr.mxu0 0.0
        %1823 = vmatpush2.msra.mxu0 0.0
        %1824 = vmatprep.subr.mxu0 0.0
        %1825 = vmatpush2.msra.mxu0 0.0
        %1826 = vmatprep.subr.mxu0 0.0
        %1827 = vmatpush2.msra.mxu0 0.0
        %1828 = vmatprep.subr.mxu0 0.0
        %1829 = vmatpush2.msra.mxu0 0.0
        %1830 = vmatprep.subr.mxu0 0.0
        %1831 = vmatpush2.msra.mxu0 0.0
        %1832 = vmatprep.subr.mxu0 0.0
        %1833 = vmatpush2.msra.mxu0 0.0
        %1834 = vmatprep.subr.mxu0 0.0
        %1835 = vmatpush2.msra.mxu0 0.0
        %1836 = vmatprep.subr.mxu0 0.0
        %1837 = vmatpush2.msra.mxu0 0.0
        %1838 = vmatprep.mubr.f32.mxu0 0.0
        %1839 = vmatmul.mubr.f32.gmra.mxu0 %v1679
        %v1840 = vpop.f32.mrf.mxu0
        %v1841 = vadd.f32 0.0, %v1840
        %v1842 = vpop.f32.mrf.mxu0
        %v1843 = vadd.f32 0.0, %v1842
        %1844 = vmatprep.mubr.f32.mxu0 0.0
        %1845 = vmatmul.mubr.f32.gmra.mxu0 %v1682
        %v1846 = vpop.f32.mrf.mxu0
        %v1847 = vadd.f32 0.0, %v1846
        %v1848 = vpop.f32.mrf.mxu0
        %v1849 = vadd.f32 0.0, %v1848
        %1850 = vmatprep.mubr.f32.mxu0 0.0
        %1851 = vmatmul.mubr.f32.gmra.mxu0 %v1685
        %v1852 = vpop.f32.mrf.mxu0
        %v1853 = vadd.f32 0.0, %v1852
        %v1854 = vpop.f32.mrf.mxu0
        %v1855 = vadd.f32 0.0, %v1854
        %1856 = vmatprep.mubr.f32.mxu0 0.0
        %1857 = vmatmul.mubr.f32.gmra.mxu0 %v1688
        %v1858 = vpop.f32.mrf.mxu0
        %v1859 = vadd.f32 0.0, %v1858
        %v1860 = vpop.f32.mrf.mxu0
        %v1861 = vadd.f32 0.0, %v1860
        %1862 = vmatprep.mubr.f32.mxu0 0.0
        %1863 = vmatmul.mubr.f32.gmra.mxu0 %v1691
        %v1864 = vpop.f32.mrf.mxu0
        %v1865 = vadd.f32 0.0, %v1864
        %v1866 = vpop.f32.mrf.mxu0
        %v1867 = vadd.f32 0.0, %v1866
        %1868 = vmatprep.mubr.f32.mxu0 0.0
        %1869 = vmatmul.mubr.f32.gmra.mxu0 %v1694
        %v1870 = vpop.f32.mrf.mxu0
        %v1871 = vadd.f32 0.0, %v1870
        %v1872 = vpop.f32.mrf.mxu0
        %v1873 = vadd.f32 0.0, %v1872
        %1874 = vmatprep.mubr.f32.mxu0 0.0
        %1875 = vmatmul.mubr.f32.gmra.mxu0 %v1697
        %v1876 = vpop.f32.mrf.mxu0
        %v1877 = vadd.f32 0.0, %v1876
        %v1878 = vpop.f32.mrf.mxu0
        %v1879 = vadd.f32 0.0, %v1878
        %1880 = vmatprep.mubr.f32.mxu0 0.0
        %1881 = vmatmul.mubr.f32.gmra.mxu0 %v1700
        %v1882 = vpop.f32.mrf.mxu0
        %v1883 = vadd.f32 0.0, %v1882
        %v1884 = vpop.f32.mrf.mxu0
        %v1885 = vadd.f32 0.0, %v1884
        %1886 = vmatprep.mubr.f32.mxu0 0.0
        %1887 = vmatmul.mubr.f32.gmra.mxu0 %v1703
        %v1888 = vpop.f32.mrf.mxu0
        %v1889 = vadd.f32 0.0, %v1888
        %v1890 = vpop.f32.mrf.mxu0
        %v1891 = vadd.f32 0.0, %v1890
        %1892 = vmatprep.mubr.f32.mxu0 0.0
        %1893 = vmatmul.mubr.f32.gmra.mxu0 %v1706
        %v1894 = vpop.f32.mrf.mxu0
        %v1895 = vadd.f32 0.0, %v1894
        %v1896 = vpop.f32.mrf.mxu0
        %v1897 = vadd.f32 0.0, %v1896
        %1898 = vmatprep.mubr.f32.mxu0 0.0
        %1899 = vmatmul.mubr.f32.gmra.mxu0 %v1709
        %v1900 = vpop.f32.mrf.mxu0
        %v1901 = vadd.f32 0.0, %v1900
        %v1902 = vpop.f32.mrf.mxu0
        %v1903 = vadd.f32 0.0, %v1902
        %1904 = vmatprep.mubr.f32.mxu0 0.0
        %1905 = vmatmul.mubr.f32.gmra.mxu0 %v1712
        %v1906 = vpop.f32.mrf.mxu0
        %v1907 = vadd.f32 0.0, %v1906
        %v1908 = vpop.f32.mrf.mxu0
        %v1909 = vadd.f32 0.0, %v1908
        %1910 = vmatprep.mubr.f32.mxu0 0.0
        %1911 = vmatmul.mubr.f32.gmra.mxu0 %v1715
        %v1912 = vpop.f32.mrf.mxu0
        %v1913 = vadd.f32 0.0, %v1912
        %v1914 = vpop.f32.mrf.mxu0
        %v1915 = vadd.f32 0.0, %v1914
        %1916 = vmatprep.mubr.f32.mxu0 0.0
        %1917 = vmatmul.mubr.f32.gmra.mxu0 %v1718
        %v1918 = vpop.f32.mrf.mxu0
        %v1919 = vadd.f32 0.0, %v1918
        %v1920 = vpop.f32.mrf.mxu0
        %v1921 = vadd.f32 0.0, %v1920
        %1922 = vmatprep.mubr.f32.mxu0 0.0
        %1923 = vmatmul.mubr.f32.gmra.mxu0 %v1721
        %v1924 = vpop.f32.mrf.mxu0
        %v1925 = vadd.f32 0.0, %v1924
        %v1926 = vpop.f32.mrf.mxu0
        %v1927 = vadd.f32 0.0, %v1926
        %1928 = vmatprep.mubr.f32.mxu0 0.0
        %1929 = vmatmul.mubr.f32.gmra.mxu0 %v1724
        %v1930 = vpop.f32.mrf.mxu0
        %v1931 = vadd.f32 0.0, %v1930
        %v1932 = vpop.f32.mrf.mxu0
        %v1933 = vadd.f32 0.0, %v1932
        %1934 = vmatprep.mubr.f32.mxu0 0.0
        %1935 = vmatmul.mubr.f32.gmra.mxu0 %v1727
        %v1936 = vpop.f32.mrf.mxu0
        %v1937 = vadd.f32 0.0, %v1936
        %v1938 = vpop.f32.mrf.mxu0
        %v1939 = vadd.f32 0.0, %v1938
        %1940 = vmatprep.mubr.f32.mxu0 0.0
        %1941 = vmatmul.mubr.f32.gmra.mxu0 %v1730
        %v1942 = vpop.f32.mrf.mxu0
        %v1943 = vadd.f32 0.0, %v1942
        %v1944 = vpop.f32.mrf.mxu0
        %v1945 = vadd.f32 0.0, %v1944
        %1946 = vmatprep.mubr.f32.mxu0 0.0
        %1947 = vmatmul.mubr.f32.gmra.mxu0 %v1733
        %v1948 = vpop.f32.mrf.mxu0
        %v1949 = vadd.f32 0.0, %v1948
        %v1950 = vpop.f32.mrf.mxu0
        %v1951 = vadd.f32 0.0, %v1950
        %1952 = vmatprep.mubr.f32.mxu0 0.0
        %1953 = vmatmul.mubr.f32.gmra.mxu0 %v1736
        %v1954 = vpop.f32.mrf.mxu0
        %v1955 = vadd.f32 0.0, %v1954
        %v1956 = vpop.f32.mrf.mxu0
        %v1957 = vadd.f32 0.0, %v1956
        %1958 = vmatprep.mubr.f32.mxu0 0.0
        %1959 = vmatmul.mubr.f32.gmra.mxu0 %v1739
        %v1960 = vpop.f32.mrf.mxu0
        %v1961 = vadd.f32 0.0, %v1960
        %v1962 = vpop.f32.mrf.mxu0
        %v1963 = vadd.f32 0.0, %v1962
        %1964 = vmatprep.mubr.f32.mxu0 0.0
        %1965 = vmatmul.mubr.f32.gmra.mxu0 %v1742
        %v1966 = vpop.f32.mrf.mxu0
        %v1967 = vadd.f32 0.0, %v1966
        %v1968 = vpop.f32.mrf.mxu0
        %v1969 = vadd.f32 0.0, %v1968
        %1970 = vmatprep.mubr.f32.mxu0 0.0
        %1971 = vmatmul.mubr.f32.gmra.mxu0 %v1745
        %v1972 = vpop.f32.mrf.mxu0
        %v1973 = vadd.f32 0.0, %v1972
        %v1974 = vpop.f32.mrf.mxu0
        %v1975 = vadd.f32 0.0, %v1974
        %1976 = vmatprep.mubr.f32.mxu0 0.0
        %1977 = vmatmul.mubr.f32.gmra.mxu0 %v1748
        %v1978 = vpop.f32.mrf.mxu0
        %v1979 = vadd.f32 0.0, %v1978
        %v1980 = vpop.f32.mrf.mxu0
        %v1981 = vadd.f32 0.0, %v1980
        %1982 = vmatprep.mubr.f32.mxu0 0.0
        %1983 = vmatmul.mubr.f32.gmra.mxu0 %v1751
        %v1984 = vpop.f32.mrf.mxu0
        %v1985 = vadd.f32 0.0, %v1984
        %v1986 = vpop.f32.mrf.mxu0
        %v1987 = vadd.f32 0.0, %v1986
        %1988 = vmatprep.mubr.f32.mxu0 0.0
        %1989 = vmatmul.mubr.f32.gmra.mxu0 %v1754
        %v1990 = vpop.f32.mrf.mxu0
        %v1991 = vadd.f32 0.0, %v1990
        %v1992 = vpop.f32.mrf.mxu0
        %v1993 = vadd.f32 0.0, %v1992
        %1994 = vmatprep.mubr.f32.mxu0 0.0
        %1995 = vmatmul.mubr.f32.gmra.mxu0 %v1757
        %v1996 = vpop.f32.mrf.mxu0
        %v1997 = vadd.f32 0.0, %v1996
        %v1998 = vpop.f32.mrf.mxu0
        %v1999 = vadd.f32 0.0, %v1998
        %2000 = vmatprep.mubr.f32.mxu0 0.0
        %2001 = vmatmul.mubr.f32.gmra.mxu0 %v1760
        %v2002 = vpop.f32.mrf.mxu0
        %v2003 = vadd.f32 0.0, %v2002
        %v2004 = vpop.f32.mrf.mxu0
        %v2005 = vadd.f32 0.0, %v2004
        %2006 = vmatprep.mubr.f32.mxu0 0.0
        %2007 = vmatmul.mubr.f32.gmra.mxu0 %v1763
        %v2008 = vpop.f32.mrf.mxu0
        %v2009 = vadd.f32 0.0, %v2008
        %v2010 = vpop.f32.mrf.mxu0
        %v2011 = vadd.f32 0.0, %v2010
        %2012 = vmatprep.mubr.f32.mxu0 0.0
        %2013 = vmatmul.mubr.f32.gmra.mxu0 %v1766
        %v2014 = vpop.f32.mrf.mxu0
        %v2015 = vadd.f32 0.0, %v2014
        %v2016 = vpop.f32.mrf.mxu0
        %v2017 = vadd.f32 0.0, %v2016
        %2018 = vmatprep.mubr.f32.mxu0 0.0
        %2019 = vmatmul.mubr.f32.gmra.mxu0 %v1769
        %v2020 = vpop.f32.mrf.mxu0
        %v2021 = vadd.f32 0.0, %v2020
        %v2022 = vpop.f32.mrf.mxu0
        %v2023 = vadd.f32 0.0, %v2022
        %2024 = vmatprep.mubr.f32.mxu0 0.0
        %2025 = vmatmul.mubr.f32.gmra.mxu0 %v1772
        %v2026 = vpop.f32.mrf.mxu0
        %v2027 = vadd.f32 0.0, %v2026
        %v2028 = vpop.f32.mrf.mxu0
        %v2029 = vadd.f32 0.0, %v2028
        %2030 = vdwg.mxu0
        %v2031 = vmax.f32 %v1841, %v1843
        %2032 = vmax.xlane.f32.xlu0 %v2031
        %v2033 = vpop.xlane.xlu0 %2032
        %v2034 = vmax.f32 %v1847, %v1849
        %2035 = vmax.xlane.f32.xlu0 %v2034
        %v2036 = vpop.xlane.xlu0 %2035
        %v2037 = vmax.f32 %v1853, %v1855
        %2038 = vmax.xlane.f32.xlu0 %v2037
        %v2039 = vpop.xlane.xlu0 %2038
        %v2040 = vmax.f32 %v1859, %v1861
        %2041 = vmax.xlane.f32.xlu0 %v2040
        %v2042 = vpop.xlane.xlu0 %2041
        %v2043 = vmax.f32 %v1865, %v1867
        %2044 = vmax.xlane.f32.xlu0 %v2043
        %v2045 = vpop.xlane.xlu0 %2044
        %v2046 = vmax.f32 %v1871, %v1873
        %2047 = vmax.xlane.f32.xlu0 %v2046
        %v2048 = vpop.xlane.xlu0 %2047
        %v2049 = vmax.f32 %v1877, %v1879
        %2050 = vmax.xlane.f32.xlu0 %v2049
        %v2051 = vpop.xlane.xlu0 %2050
        %v2052 = vmax.f32 %v1883, %v1885
        %2053 = vmax.xlane.f32.xlu0 %v2052
        %v2054 = vpop.xlane.xlu0 %2053
        %v2055 = vmax.f32 %v1889, %v1891
        %2056 = vmax.xlane.f32.xlu0 %v2055
        %v2057 = vpop.xlane.xlu0 %2056
        %v2058 = vmax.f32 %v1895, %v1897
        %2059 = vmax.xlane.f32.xlu0 %v2058
        %v2060 = vpop.xlane.xlu0 %2059
        %v2061 = vmax.f32 %v1901, %v1903
        %2062 = vmax.xlane.f32.xlu0 %v2061
        %v2063 = vpop.xlane.xlu0 %2062
        %v2064 = vmax.f32 %v1907, %v1909
        %2065 = vmax.xlane.f32.xlu0 %v2064
        %v2066 = vpop.xlane.xlu0 %2065
        %v2067 = vmax.f32 %v1913, %v1915
        %2068 = vmax.xlane.f32.xlu0 %v2067
        %v2069 = vpop.xlane.xlu0 %2068
        %v2070 = vmax.f32 %v1919, %v1921
        %2071 = vmax.xlane.f32.xlu0 %v2070
        %v2072 = vpop.xlane.xlu0 %2071
        %v2073 = vmax.f32 %v1925, %v1927
        %2074 = vmax.xlane.f32.xlu0 %v2073
        %v2075 = vpop.xlane.xlu0 %2074
        %v2076 = vmax.f32 %v1931, %v1933
        %2077 = vmax.xlane.f32.xlu0 %v2076
        %v2078 = vpop.xlane.xlu0 %2077
        %v2079 = vmax.f32 %v1937, %v1939
        %2080 = vmax.xlane.f32.xlu0 %v2079
        %v2081 = vpop.xlane.xlu0 %2080
        %v2082 = vmax.f32 %v1943, %v1945
        %2083 = vmax.xlane.f32.xlu0 %v2082
        %v2084 = vpop.xlane.xlu0 %2083
        %v2085 = vmax.f32 %v1949, %v1951
        %2086 = vmax.xlane.f32.xlu0 %v2085
        %v2087 = vpop.xlane.xlu0 %2086
        %v2088 = vmax.f32 %v1955, %v1957
        %2089 = vmax.xlane.f32.xlu0 %v2088
        %v2090 = vpop.xlane.xlu0 %2089
        %v2091 = vmax.f32 %v1961, %v1963
        %2092 = vmax.xlane.f32.xlu0 %v2091
        %v2093 = vpop.xlane.xlu0 %2092
        %v2094 = vmax.f32 %v1967, %v1969
        %2095 = vmax.xlane.f32.xlu0 %v2094
        %v2096 = vpop.xlane.xlu0 %2095
        %v2097 = vmax.f32 %v1973, %v1975
        %2098 = vmax.xlane.f32.xlu0 %v2097
        %v2099 = vpop.xlane.xlu0 %2098
        %v2100 = vmax.f32 %v1979, %v1981
        %2101 = vmax.xlane.f32.xlu0 %v2100
        %v2102 = vpop.xlane.xlu0 %2101
        %v2103 = vmax.f32 %v1985, %v1987
        %2104 = vmax.xlane.f32.xlu0 %v2103
        %v2105 = vpop.xlane.xlu0 %2104
        %v2106 = vmax.f32 %v1991, %v1993
        %2107 = vmax.xlane.f32.xlu0 %v2106
        %v2108 = vpop.xlane.xlu0 %2107
        %v2109 = vmax.f32 %v1997, %v1999
        %2110 = vmax.xlane.f32.xlu0 %v2109
        %v2111 = vpop.xlane.xlu0 %2110
        %v2112 = vmax.f32 %v2003, %v2005
        %2113 = vmax.xlane.f32.xlu0 %v2112
        %v2114 = vpop.xlane.xlu0 %2113
        %v2115 = vmax.f32 %v2009, %v2011
        %2116 = vmax.xlane.f32.xlu0 %v2115
        %v2117 = vpop.xlane.xlu0 %2116
        %v2118 = vmax.f32 %v2015, %v2017
        %2119 = vmax.xlane.f32.xlu0 %v2118
        %v2120 = vpop.xlane.xlu0 %2119
        %v2121 = vmax.f32 %v2021, %v2023
        %2122 = vmax.xlane.f32.xlu0 %v2121
        %v2123 = vpop.xlane.xlu0 %2122
        %v2124 = vmax.f32 %v2027, %v2029
        %2125 = vmax.xlane.f32.xlu0 %v2124
        %v2126 = vpop.xlane.xlu0 %2125
        %v2127 = vsub.f32 %v1841, %v2033
        %v2128 = vsub.f32 %v1843, %v2033
        %v2129 = vsub.f32 %v1847, %v2036
        %v2130 = vsub.f32 %v1849, %v2036
        %v2131 = vsub.f32 %v1853, %v2039
        %v2132 = vsub.f32 %v1855, %v2039
        %v2133 = vsub.f32 %v1859, %v2042
        %v2134 = vsub.f32 %v1861, %v2042
        %v2135 = vsub.f32 %v1865, %v2045
        %v2136 = vsub.f32 %v1867, %v2045
        %v2137 = vsub.f32 %v1871, %v2048
        %v2138 = vsub.f32 %v1873, %v2048
        %v2139 = vsub.f32 %v1877, %v2051
        %v2140 = vsub.f32 %v1879, %v2051
        %v2141 = vsub.f32 %v1883, %v2054
        %v2142 = vsub.f32 %v1885, %v2054
        %v2143 = vsub.f32 %v1889, %v2057
        %v2144 = vsub.f32 %v1891, %v2057
        %v2145 = vsub.f32 %v1895, %v2060
        %v2146 = vsub.f32 %v1897, %v2060
        %v2147 = vsub.f32 %v1901, %v2063
        %v2148 = vsub.f32 %v1903, %v2063
        %v2149 = vsub.f32 %v1907, %v2066
        %v2150 = vsub.f32 %v1909, %v2066
        %v2151 = vsub.f32 %v1913, %v2069
        %v2152 = vsub.f32 %v1915, %v2069
        %v2153 = vsub.f32 %v1919, %v2072
        %v2154 = vsub.f32 %v1921, %v2072
        %v2155 = vsub.f32 %v1925, %v2075
        %v2156 = vsub.f32 %v1927, %v2075
        %v2157 = vsub.f32 %v1931, %v2078
        %v2158 = vsub.f32 %v1933, %v2078
        %v2159 = vsub.f32 %v1937, %v2081
        %v2160 = vsub.f32 %v1939, %v2081
        %v2161 = vsub.f32 %v1943, %v2084
        %v2162 = vsub.f32 %v1945, %v2084
        %v2163 = vsub.f32 %v1949, %v2087
        %v2164 = vsub.f32 %v1951, %v2087
        %v2165 = vsub.f32 %v1955, %v2090
        %v2166 = vsub.f32 %v1957, %v2090
        %v2167 = vsub.f32 %v1961, %v2093
        %v2168 = vsub.f32 %v1963, %v2093
        %v2169 = vsub.f32 %v1967, %v2096
        %v2170 = vsub.f32 %v1969, %v2096
        %v2171 = vsub.f32 %v1973, %v2099
        %v2172 = vsub.f32 %v1975, %v2099
        %v2173 = vsub.f32 %v1979, %v2102
        %v2174 = vsub.f32 %v1981, %v2102
        %v2175 = vsub.f32 %v1985, %v2105
        %v2176 = vsub.f32 %v1987, %v2105
        %v2177 = vsub.f32 %v1991, %v2108
        %v2178 = vsub.f32 %v1993, %v2108
        %v2179 = vsub.f32 %v1997, %v2111
        %v2180 = vsub.f32 %v1999, %v2111
        %v2181 = vsub.f32 %v2003, %v2114
        %v2182 = vsub.f32 %v2005, %v2114
        %v2183 = vsub.f32 %v2009, %v2117
        %v2184 = vsub.f32 %v2011, %v2117
        %v2185 = vsub.f32 %v2015, %v2120
        %v2186 = vsub.f32 %v2017, %v2120
        %v2187 = vsub.f32 %v2021, %v2123
        %v2188 = vsub.f32 %v2023, %v2123
        %v2189 = vsub.f32 %v2027, %v2126
        %v2190 = vsub.f32 %v2029, %v2126
        %v2191 = vmul.f32 %v2127, 1.442695
        %v2192 = vpow.pop %v2191
        %v2193 = vmul.f32 %v2128, 1.442695
        %v2194 = vpow.pop %v2193
        %v2195 = vmul.f32 %v2129, 1.442695
        %v2196 = vpow.pop %v2195
        %v2197 = vmul.f32 %v2130, 1.442695
        %v2198 = vpow.pop %v2197
        %v2199 = vmul.f32 %v2131, 1.442695
        %v2200 = vpow.pop %v2199
        %v2201 = vmul.f32 %v2132, 1.442695
        %v2202 = vpow.pop %v2201
        %v2203 = vmul.f32 %v2133, 1.442695
        %v2204 = vpow.pop %v2203
        %v2205 = vmul.f32 %v2134, 1.442695
        %v2206 = vpow.pop %v2205
        %v2207 = vmul.f32 %v2135, 1.442695
        %v2208 = vpow.pop %v2207
        %v2209 = vmul.f32 %v2136, 1.442695
        %v2210 = vpow.pop %v2209
        %v2211 = vmul.f32 %v2137, 1.442695
        %v2212 = vpow.pop %v2211
        %v2213 = vmul.f32 %v2138, 1.442695
        %v2214 = vpow.pop %v2213
        %v2215 = vmul.f32 %v2139, 1.442695
        %v2216 = vpow.pop %v2215
        %v2217 = vmul.f32 %v2140, 1.442695
        %v2218 = vpow.pop %v2217
        %v2219 = vmul.f32 %v2141, 1.442695
        %v2220 = vpow.pop %v2219
        %v2221 = vmul.f32 %v2142, 1.442695
        %v2222 = vpow.pop %v2221
        %v2223 = vmul.f32 %v2143, 1.442695
        %v2224 = vpow.pop %v2223
        %v2225 = vmul.f32 %v2144, 1.442695
        %v2226 = vpow.pop %v2225
        %v2227 = vmul.f32 %v2145, 1.442695
        %v2228 = vpow.pop %v2227
        %v2229 = vmul.f32 %v2146, 1.442695
        %v2230 = vpow.pop %v2229
        %v2231 = vmul.f32 %v2147, 1.442695
        %v2232 = vpow.pop %v2231
        %v2233 = vmul.f32 %v2148, 1.442695
        %v2234 = vpow.pop %v2233
        %v2235 = vmul.f32 %v2149, 1.442695
        %v2236 = vpow.pop %v2235
        %v2237 = vmul.f32 %v2150, 1.442695
        %v2238 = vpow.pop %v2237
        %v2239 = vmul.f32 %v2151, 1.442695
        %v2240 = vpow.pop %v2239
        %v2241 = vmul.f32 %v2152, 1.442695
        %v2242 = vpow.pop %v2241
        %v2243 = vmul.f32 %v2153, 1.442695
        %v2244 = vpow.pop %v2243
        %v2245 = vmul.f32 %v2154, 1.442695
        %v2246 = vpow.pop %v2245
        %v2247 = vmul.f32 %v2155, 1.442695
        %v2248 = vpow.pop %v2247
        %v2249 = vmul.f32 %v2156, 1.442695
        %v2250 = vpow.pop %v2249
        %v2251 = vmul.f32 %v2157, 1.442695
        %v2252 = vpow.pop %v2251
        %v2253 = vmul.f32 %v2158, 1.442695
        %v2254 = vpow.pop %v2253
        %v2255 = vmul.f32 %v2159, 1.442695
        %v2256 = vpow.pop %v2255
        %v2257 = vmul.f32 %v2160, 1.442695
        %v2258 = vpow.pop %v2257
        %v2259 = vmul.f32 %v2161, 1.442695
        %v2260 = vpow.pop %v2259
        %v2261 = vmul.f32 %v2162, 1.442695
        %v2262 = vpow.pop %v2261
        %v2263 = vmul.f32 %v2163, 1.442695
        %v2264 = vpow.pop %v2263
        %v2265 = vmul.f32 %v2164, 1.442695
        %v2266 = vpow.pop %v2265
        %v2267 = vmul.f32 %v2165, 1.442695
        %v2268 = vpow.pop %v2267
        %v2269 = vmul.f32 %v2166, 1.442695
        %v2270 = vpow.pop %v2269
        %v2271 = vmul.f32 %v2167, 1.442695
        %v2272 = vpow.pop %v2271
        %v2273 = vmul.f32 %v2168, 1.442695
        %v2274 = vpow.pop %v2273
        %v2275 = vmul.f32 %v2169, 1.442695
        %v2276 = vpow.pop %v2275
        %v2277 = vmul.f32 %v2170, 1.442695
        %v2278 = vpow.pop %v2277
        %v2279 = vmul.f32 %v2171, 1.442695
        %v2280 = vpow.pop %v2279
        %v2281 = vmul.f32 %v2172, 1.442695
        %v2282 = vpow.pop %v2281
        %v2283 = vmul.f32 %v2173, 1.442695
        %v2284 = vpow.pop %v2283
        %v2285 = vmul.f32 %v2174, 1.442695
        %v2286 = vpow.pop %v2285
        %v2287 = vmul.f32 %v2175, 1.442695
        %v2288 = vpow.pop %v2287
        %v2289 = vmul.f32 %v2176, 1.442695
        %v2290 = vpow.pop %v2289
        %v2291 = vmul.f32 %v2177, 1.442695
        %v2292 = vpow.pop %v2291
        %v2293 = vmul.f32 %v2178, 1.442695
        %v2294 = vpow.pop %v2293
        %v2295 = vmul.f32 %v2179, 1.442695
        %v2296 = vpow.pop %v2295
        %v2297 = vmul.f32 %v2180, 1.442695
        %v2298 = vpow.pop %v2297
        %v2299 = vmul.f32 %v2181, 1.442695
        %v2300 = vpow.pop %v2299
        %v2301 = vmul.f32 %v2182, 1.442695
        %v2302 = vpow.pop %v2301
        %v2303 = vmul.f32 %v2183, 1.442695
        %v2304 = vpow.pop %v2303
        %v2305 = vmul.f32 %v2184, 1.442695
        %v2306 = vpow.pop %v2305
        %v2307 = vmul.f32 %v2185, 1.442695
        %v2308 = vpow.pop %v2307
        %v2309 = vmul.f32 %v2186, 1.442695
        %v2310 = vpow.pop %v2309
        %v2311 = vmul.f32 %v2187, 1.442695
        %v2312 = vpow.pop %v2311
        %v2313 = vmul.f32 %v2188, 1.442695
        %v2314 = vpow.pop %v2313
        %v2315 = vmul.f32 %v2189, 1.442695
        %v2316 = vpow.pop %v2315
        %v2317 = vmul.f32 %v2190, 1.442695
        %v2318 = vpow.pop %v2317
        %v2319 = vadd.f32 %v2192, %v2194
        %2320 = vadd.xlane.f32.xlu0 %v2319
        %v2321 = vpop.xlane.xlu0 %2320
        %v2322 = vadd.f32 %v2196, %v2198
        %2323 = vadd.xlane.f32.xlu0 %v2322
        %v2324 = vpop.xlane.xlu0 %2323
        %v2325 = vadd.f32 %v2200, %v2202
        %2326 = vadd.xlane.f32.xlu0 %v2325
        %v2327 = vpop.xlane.xlu0 %2326
        %v2328 = vadd.f32 %v2204, %v2206
        %2329 = vadd.xlane.f32.xlu0 %v2328
        %v2330 = vpop.xlane.xlu0 %2329
        %v2331 = vadd.f32 %v2208, %v2210
        %2332 = vadd.xlane.f32.xlu0 %v2331
        %v2333 = vpop.xlane.xlu0 %2332
        %v2334 = vadd.f32 %v2212, %v2214
        %2335 = vadd.xlane.f32.xlu0 %v2334
        %v2336 = vpop.xlane.xlu0 %2335
        %v2337 = vadd.f32 %v2216, %v2218
        %2338 = vadd.xlane.f32.xlu0 %v2337
        %v2339 = vpop.xlane.xlu0 %2338
        %v2340 = vadd.f32 %v2220, %v2222
        %2341 = vadd.xlane.f32.xlu0 %v2340
        %v2342 = vpop.xlane.xlu0 %2341
        %v2343 = vadd.f32 %v2224, %v2226
        %2344 = vadd.xlane.f32.xlu0 %v2343
        %v2345 = vpop.xlane.xlu0 %2344
        %v2346 = vadd.f32 %v2228, %v2230
        %2347 = vadd.xlane.f32.xlu0 %v2346
        %v2348 = vpop.xlane.xlu0 %2347
        %v2349 = vadd.f32 %v2232, %v2234
        %2350 = vadd.xlane.f32.xlu0 %v2349
        %v2351 = vpop.xlane.xlu0 %2350
        %v2352 = vadd.f32 %v2236, %v2238
        %2353 = vadd.xlane.f32.xlu0 %v2352
        %v2354 = vpop.xlane.xlu0 %2353
        %v2355 = vadd.f32 %v2240, %v2242
        %2356 = vadd.xlane.f32.xlu0 %v2355
        %v2357 = vpop.xlane.xlu0 %2356
        %v2358 = vadd.f32 %v2244, %v2246
        %2359 = vadd.xlane.f32.xlu0 %v2358
        %v2360 = vpop.xlane.xlu0 %2359
        %v2361 = vadd.f32 %v2248, %v2250
        %2362 = vadd.xlane.f32.xlu0 %v2361
        %v2363 = vpop.xlane.xlu0 %2362
        %v2364 = vadd.f32 %v2252, %v2254
        %2365 = vadd.xlane.f32.xlu0 %v2364
        %v2366 = vpop.xlane.xlu0 %2365
        %v2367 = vadd.f32 %v2256, %v2258
        %2368 = vadd.xlane.f32.xlu0 %v2367
        %v2369 = vpop.xlane.xlu0 %2368
        %v2370 = vadd.f32 %v2260, %v2262
        %2371 = vadd.xlane.f32.xlu0 %v2370
        %v2372 = vpop.xlane.xlu0 %2371
        %v2373 = vadd.f32 %v2264, %v2266
        %2374 = vadd.xlane.f32.xlu0 %v2373
        %v2375 = vpop.xlane.xlu0 %2374
        %v2376 = vadd.f32 %v2268, %v2270
        %2377 = vadd.xlane.f32.xlu0 %v2376
        %v2378 = vpop.xlane.xlu0 %2377
        %v2379 = vadd.f32 %v2272, %v2274
        %2380 = vadd.xlane.f32.xlu0 %v2379
        %v2381 = vpop.xlane.xlu0 %2380
        %v2382 = vadd.f32 %v2276, %v2278
        %2383 = vadd.xlane.f32.xlu0 %v2382
        %v2384 = vpop.xlane.xlu0 %2383
        %v2385 = vadd.f32 %v2280, %v2282
        %2386 = vadd.xlane.f32.xlu0 %v2385
        %v2387 = vpop.xlane.xlu0 %2386
        %v2388 = vadd.f32 %v2284, %v2286
        %2389 = vadd.xlane.f32.xlu0 %v2388
        %v2390 = vpop.xlane.xlu0 %2389
        %v2391 = vadd.f32 %v2288, %v2290
        %2392 = vadd.xlane.f32.xlu0 %v2391
        %v2393 = vpop.xlane.xlu0 %2392
        %v2394 = vadd.f32 %v2292, %v2294
        %2395 = vadd.xlane.f32.xlu0 %v2394
        %v2396 = vpop.xlane.xlu0 %2395
        %v2397 = vadd.f32 %v2296, %v2298
        %2398 = vadd.xlane.f32.xlu0 %v2397
        %v2399 = vpop.xlane.xlu0 %2398
        %v2400 = vadd.f32 %v2300, %v2302
        %2401 = vadd.xlane.f32.xlu0 %v2400
        %v2402 = vpop.xlane.xlu0 %2401
        %v2403 = vadd.f32 %v2304, %v2306
        %2404 = vadd.xlane.f32.xlu0 %v2403
        %v2405 = vpop.xlane.xlu0 %2404
        %v2406 = vadd.f32 %v2308, %v2310
        %2407 = vadd.xlane.f32.xlu0 %v2406
        %v2408 = vpop.xlane.xlu0 %2407
        %v2409 = vadd.f32 %v2312, %v2314
        %2410 = vadd.xlane.f32.xlu0 %v2409
        %v2411 = vpop.xlane.xlu0 %2410
        %v2412 = vadd.f32 %v2316, %v2318
        %2413 = vadd.xlane.f32.xlu0 %v2412
        %v2414 = vpop.xlane.xlu0 %2413
        %v2415 = vrcp.pop %v2321
        %v2416 = vmul.f32 1.0, %v2415
        %v2417 = vrcp.pop %v2324
        %v2418 = vmul.f32 1.0, %v2417
        %v2419 = vrcp.pop %v2327
        %v2420 = vmul.f32 1.0, %v2419
        %v2421 = vrcp.pop %v2330
        %v2422 = vmul.f32 1.0, %v2421
        %v2423 = vrcp.pop %v2333
        %v2424 = vmul.f32 1.0, %v2423
        %v2425 = vrcp.pop %v2336
        %v2426 = vmul.f32 1.0, %v2425
        %v2427 = vrcp.pop %v2339
        %v2428 = vmul.f32 1.0, %v2427
        %v2429 = vrcp.pop %v2342
        %v2430 = vmul.f32 1.0, %v2429
        %v2431 = vrcp.pop %v2345
        %v2432 = vmul.f32 1.0, %v2431
        %v2433 = vrcp.pop %v2348
        %v2434 = vmul.f32 1.0, %v2433
        %v2435 = vrcp.pop %v2351
        %v2436 = vmul.f32 1.0, %v2435
        %v2437 = vrcp.pop %v2354
        %v2438 = vmul.f32 1.0, %v2437
        %v2439 = vrcp.pop %v2357
        %v2440 = vmul.f32 1.0, %v2439
        %v2441 = vrcp.pop %v2360
        %v2442 = vmul.f32 1.0, %v2441
        %v2443 = vrcp.pop %v2363
        %v2444 = vmul.f32 1.0, %v2443
        %v2445 = vrcp.pop %v2366
        %v2446 = vmul.f32 1.0, %v2445
        %v2447 = vrcp.pop %v2369
        %v2448 = vmul.f32 1.0, %v2447
        %v2449 = vrcp.pop %v2372
        %v2450 = vmul.f32 1.0, %v2449
        %v2451 = vrcp.pop %v2375
        %v2452 = vmul.f32 1.0, %v2451
        %v2453 = vrcp.pop %v2378
        %v2454 = vmul.f32 1.0, %v2453
        %v2455 = vrcp.pop %v2381
        %v2456 = vmul.f32 1.0, %v2455
        %v2457 = vrcp.pop %v2384
        %v2458 = vmul.f32 1.0, %v2457
        %v2459 = vrcp.pop %v2387
        %v2460 = vmul.f32 1.0, %v2459
        %v2461 = vrcp.pop %v2390
        %v2462 = vmul.f32 1.0, %v2461
        %v2463 = vrcp.pop %v2393
        %v2464 = vmul.f32 1.0, %v2463
        %v2465 = vrcp.pop %v2396
        %v2466 = vmul.f32 1.0, %v2465
        %v2467 = vrcp.pop %v2399
        %v2468 = vmul.f32 1.0, %v2467
        %v2469 = vrcp.pop %v2402
        %v2470 = vmul.f32 1.0, %v2469
        %v2471 = vrcp.pop %v2405
        %v2472 = vmul.f32 1.0, %v2471
        %v2473 = vrcp.pop %v2408
        %v2474 = vmul.f32 1.0, %v2473
        %v2475 = vrcp.pop %v2411
        %v2476 = vmul.f32 1.0, %v2475
        %v2477 = vrcp.pop %v2414
        %v2478 = vmul.f32 1.0, %v2477
        %v2479 = vmul.f32 %v2192, %v2416
        %v2480 = vmul.f32 %v2194, %v2416
        %v2481 = vmul.f32 %v2196, %v2418
        %v2482 = vmul.f32 %v2198, %v2418
        %v2483 = vmul.f32 %v2200, %v2420
        %v2484 = vmul.f32 %v2202, %v2420
        %v2485 = vmul.f32 %v2204, %v2422
        %v2486 = vmul.f32 %v2206, %v2422
        %v2487 = vmul.f32 %v2208, %v2424
        %v2488 = vmul.f32 %v2210, %v2424
        %v2489 = vmul.f32 %v2212, %v2426
        %v2490 = vmul.f32 %v2214, %v2426
        %v2491 = vmul.f32 %v2216, %v2428
        %v2492 = vmul.f32 %v2218, %v2428
        %v2493 = vmul.f32 %v2220, %v2430
        %v2494 = vmul.f32 %v2222, %v2430
        %v2495 = vmul.f32 %v2224, %v2432
        %v2496 = vmul.f32 %v2226, %v2432
        %v2497 = vmul.f32 %v2228, %v2434
        %v2498 = vmul.f32 %v2230, %v2434
        %v2499 = vmul.f32 %v2232, %v2436
        %v2500 = vmul.f32 %v2234, %v2436
        %v2501 = vmul.f32 %v2236, %v2438
        %v2502 = vmul.f32 %v2238, %v2438
        %v2503 = vmul.f32 %v2240, %v2440
        %v2504 = vmul.f32 %v2242, %v2440
        %v2505 = vmul.f32 %v2244, %v2442
        %v2506 = vmul.f32 %v2246, %v2442
        %v2507 = vmul.f32 %v2248, %v2444
        %v2508 = vmul.f32 %v2250, %v2444
        %v2509 = vmul.f32 %v2252, %v2446
        %v2510 = vmul.f32 %v2254, %v2446
        %v2511 = vmul.f32 %v2256, %v2448
        %v2512 = vmul.f32 %v2258, %v2448
        %v2513 = vmul.f32 %v2260, %v2450
        %v2514 = vmul.f32 %v2262, %v2450
        %v2515 = vmul.f32 %v2264, %v2452
        %v2516 = vmul.f32 %v2266, %v2452
        %v2517 = vmul.f32 %v2268, %v2454
        %v2518 = vmul.f32 %v2270, %v2454
        %v2519 = vmul.f32 %v2272, %v2456
        %v2520 = vmul.f32 %v2274, %v2456
        %v2521 = vmul.f32 %v2276, %v2458
        %v2522 = vmul.f32 %v2278, %v2458
        %v2523 = vmul.f32 %v2280, %v2460
        %v2524 = vmul.f32 %v2282, %v2460
        %v2525 = vmul.f32 %v2284, %v2462
        %v2526 = vmul.f32 %v2286, %v2462
        %v2527 = vmul.f32 %v2288, %v2464
        %v2528 = vmul.f32 %v2290, %v2464
        %v2529 = vmul.f32 %v2292, %v2466
        %v2530 = vmul.f32 %v2294, %v2466
        %v2531 = vmul.f32 %v2296, %v2468
        %v2532 = vmul.f32 %v2298, %v2468
        %v2533 = vmul.f32 %v2300, %v2470
        %v2534 = vmul.f32 %v2302, %v2470
        %v2535 = vmul.f32 %v2304, %v2472
        %v2536 = vmul.f32 %v2306, %v2472
        %v2537 = vmul.f32 %v2308, %v2474
        %v2538 = vmul.f32 %v2310, %v2474
        %v2539 = vmul.f32 %v2312, %v2476
        %v2540 = vmul.f32 %v2314, %v2476
        %v2541 = vmul.f32 %v2316, %v2478
        %v2542 = vmul.f32 %v2318, %v2478
        %2543 = vmatprep.subr.mxu0 %v2510
        %2544 = vmatpush1.xpose.msra.mxu0 %v2509
        %2545 = vmatprep.subr.mxu0 %v2508
        %2546 = vmatpush1.xpose.msra.mxu0 %v2507
        %2547 = vmatprep.subr.mxu0 %v2506
        %2548 = vmatpush1.xpose.msra.mxu0 %v2505
        %2549 = vmatprep.subr.mxu0 %v2504
        %2550 = vmatpush1.xpose.msra.mxu0 %v2503
        %2551 = vmatprep.subr.mxu0 %v2502
        %2552 = vmatpush1.xpose.msra.mxu0 %v2501
        %2553 = vmatprep.subr.mxu0 %v2500
        %2554 = vmatpush1.xpose.msra.mxu0 %v2499
        %2555 = vmatprep.subr.mxu0 %v2498
        %2556 = vmatpush1.xpose.msra.mxu0 %v2497
        %2557 = vmatprep.subr.mxu0 %v2496
        %2558 = vmatpush1.xpose.msra.mxu0 %v2495
        %2559 = vmatprep.subr.mxu0 %v2494
        %2560 = vmatpush1.xpose.msra.mxu0 %v2493
        %2561 = vmatprep.subr.mxu0 %v2492
        %2562 = vmatpush1.xpose.msra.mxu0 %v2491
        %2563 = vmatprep.subr.mxu0 %v2490
        %2564 = vmatpush1.xpose.msra.mxu0 %v2489
        %2565 = vmatprep.subr.mxu0 %v2488
        %2566 = vmatpush1.xpose.msra.mxu0 %v2487
        %2567 = vmatprep.subr.mxu0 %v2486
        %2568 = vmatpush1.xpose.msra.mxu0 %v2485
        %2569 = vmatprep.subr.mxu0 %v2484
        %2570 = vmatpush1.xpose.msra.mxu0 %v2483
        %2571 = vmatprep.subr.mxu0 %v2482
        %2572 = vmatpush1.xpose.msra.mxu0 %v2481
        %2573 = vmatprep.subr.mxu0 %v2480
        %2574 = vmatpush1.xpose.msra.mxu0 %v2479
        %2575 = vmatprep.subr.mxu0 %v2542
        %2576 = vmatpush2.xpose.msra.mxu0 %v2541
        %2577 = vmatprep.subr.mxu0 %v2540
        %2578 = vmatpush2.xpose.msra.mxu0 %v2539
        %2579 = vmatprep.subr.mxu0 %v2538
        %2580 = vmatpush2.xpose.msra.mxu0 %v2537
        %2581 = vmatprep.subr.mxu0 %v2536
        %2582 = vmatpush2.xpose.msra.mxu0 %v2535
        %2583 = vmatprep.subr.mxu0 %v2534
        %2584 = vmatpush2.xpose.msra.mxu0 %v2533
        %2585 = vmatprep.subr.mxu0 %v2532
        %2586 = vmatpush2.xpose.msra.mxu0 %v2531
        %2587 = vmatprep.subr.mxu0 %v2530
        %2588 = vmatpush2.xpose.msra.mxu0 %v2529
        %2589 = vmatprep.subr.mxu0 %v2528
        %2590 = vmatpush2.xpose.msra.mxu0 %v2527
        %2591 = vmatprep.subr.mxu0 %v2526
        %2592 = vmatpush2.xpose.msra.mxu0 %v2525
        %2593 = vmatprep.subr.mxu0 %v2524
        %2594 = vmatpush2.xpose.msra.mxu0 %v2523
        %2595 = vmatprep.subr.mxu0 %v2522
        %2596 = vmatpush2.xpose.msra.mxu0 %v2521
        %2597 = vmatprep.subr.mxu0 %v2520
        %2598 = vmatpush2.xpose.msra.mxu0 %v2519
        %2599 = vmatprep.subr.mxu0 %v2518
        %2600 = vmatpush2.xpose.msra.mxu0 %v2517
        %2601 = vmatprep.subr.mxu0 %v2516
        %2602 = vmatpush2.xpose.msra.mxu0 %v2515
        %2603 = vmatprep.subr.mxu0 %v2514
        %2604 = vmatpush2.xpose.msra.mxu0 %v2513
        %2605 = vmatprep.subr.mxu0 %v2512
        %2606 = vmatpush2.xpose.msra.mxu0 %v2511
        %2607 = vmatprep.mubr.f32.mxu0 %v1554
        %2608 = vmatmul.mubr.f32.gmra.mxu0 %v1552
        %v2609 = vpop.f32.mrf.mxu0
        %v2610 = vadd.f32 0.0, %v2609
        %v2611 = vpop.f32.mrf.mxu0
        %v2612 = vadd.f32 0.0, %v2611
        %2613 = vmatprep.mubr.f32.mxu0 %v1560
        %2614 = vmatmul.mubr.f32.gmra.mxu0 %v1558
        %v2615 = vpop.f32.mrf.mxu0
        %v2616 = vadd.f32 0.0, %v2615
        %v2617 = vpop.f32.mrf.mxu0
        %v2618 = vadd.f32 0.0, %v2617
        %2619 = vmatprep.mubr.f32.mxu0 %v1566
        %2620 = vmatmul.mubr.f32.gmra.mxu0 %v1564
        %v2621 = vpop.f32.mrf.mxu0
        %v2622 = vadd.f32 0.0, %v2621
        %v2623 = vpop.f32.mrf.mxu0
        %v2624 = vadd.f32 0.0, %v2623
        %2625 = vmatprep.mubr.f32.mxu0 %v1572
        %2626 = vmatmul.mubr.f32.gmra.mxu0 %v1570
        %v2627 = vpop.f32.mrf.mxu0
        %v2628 = vadd.f32 0.0, %v2627
        %v2629 = vpop.f32.mrf.mxu0
        %v2630 = vadd.f32 0.0, %v2629
        %2631 = vmatprep.mubr.f32.mxu0 %v1578
        %2632 = vmatmul.mubr.f32.gmra.mxu0 %v1576
        %v2633 = vpop.f32.mrf.mxu0
        %v2634 = vadd.f32 0.0, %v2633
        %v2635 = vpop.f32.mrf.mxu0
        %v2636 = vadd.f32 0.0, %v2635
        %2637 = vmatprep.mubr.f32.mxu0 %v1584
        %2638 = vmatmul.mubr.f32.gmra.mxu0 %v1582
        %v2639 = vpop.f32.mrf.mxu0
        %v2640 = vadd.f32 0.0, %v2639
        %v2641 = vpop.f32.mrf.mxu0
        %v2642 = vadd.f32 0.0, %v2641
        %2643 = vmatprep.mubr.f32.mxu0 %v1590
        %2644 = vmatmul.mubr.f32.gmra.mxu0 %v1588
        %v2645 = vpop.f32.mrf.mxu0
        %v2646 = vadd.f32 0.0, %v2645
        %v2647 = vpop.f32.mrf.mxu0
        %v2648 = vadd.f32 0.0, %v2647
        %2649 = vmatprep.mubr.f32.mxu0 %v1596
        %2650 = vmatmul.mubr.f32.gmra.mxu0 %v1594
        %v2651 = vpop.f32.mrf.mxu0
        %v2652 = vadd.f32 0.0, %v2651
        %v2653 = vpop.f32.mrf.mxu0
        %v2654 = vadd.f32 0.0, %v2653
        %2655 = vdwg.mxu0
        %v2656 = vld [vmem:[#allocation7] sm:$0xff]
        %v2657 = vld [vmem:[#allocation7 + $0x8] sm:$0xff]
        %v2658 = vld [vmem:[#allocation7 + $0x10] sm:$0xff]
        %v2659 = vld [vmem:[#allocation7 + $0x18] sm:$0xff]
        %v2660 = vld [vmem:[#allocation7 + $0x20] sm:$0xff]
        %v2661 = vld [vmem:[#allocation7 + $0x28] sm:$0xff]
        %v2662 = vld [vmem:[#allocation7 + $0x30] sm:$0xff]
        %v2663 = vld [vmem:[#allocation7 + $0x38] sm:$0xff]
        %v2664 = vld [vmem:[%s11] sm:$0xff]
        %v2665 = vld [vmem:[%s11 + $0x8] sm:$0xff]
        %v2666 = vld [vmem:[%s11 + $0x10] sm:$0xff]
        %v2667 = vld [vmem:[%s11 + $0x18] sm:$0xff]
        %v2668 = vld [vmem:[%s11 + $0x20] sm:$0xff]
        %v2669 = vld [vmem:[%s11 + $0x28] sm:$0xff]
        %v2670 = vld [vmem:[%s11 + $0x30] sm:$0xff]
        %v2671 = vld [vmem:[%s11 + $0x38] sm:$0xff]
        %2673 = vset.pattern.permute.xlu0 0
        %2674 = vperm.xlu0 %2673, %v2664
        %v2675 = vpop.permute.xlu0 %2674
        %2678 = vset.pattern.permute.xlu0 0
        %2679 = vperm.xlu0 %2678, %v2665
        %v2680 = vpop.permute.xlu0 %2679
        %2683 = vset.pattern.permute.xlu0 0
        %2684 = vperm.xlu0 %2683, %v2666
        %v2685 = vpop.permute.xlu0 %2684
        %2688 = vset.pattern.permute.xlu0 0
        %2689 = vperm.xlu0 %2688, %v2667
        %v2690 = vpop.permute.xlu0 %2689
        %2693 = vset.pattern.permute.xlu0 0
        %2694 = vperm.xlu0 %2693, %v2668
        %v2695 = vpop.permute.xlu0 %2694
        %2698 = vset.pattern.permute.xlu0 0
        %2699 = vperm.xlu0 %2698, %v2669
        %v2700 = vpop.permute.xlu0 %2699
        %2703 = vset.pattern.permute.xlu0 0
        %2704 = vperm.xlu0 %2703, %v2670
        %v2705 = vpop.permute.xlu0 %2704
        %2708 = vset.pattern.permute.xlu0 0
        %2709 = vperm.xlu0 %2708, %v2671
        %v2710 = vpop.permute.xlu0 %2709
        %v2713 = vsel %vm544, %v2656, 0
        %v2716 = vsel %vm544, %v2657, 0
        %v2719 = vsel %vm544, %v2658, 0
        %v2722 = vsel %vm544, %v2659, 0
        %v2725 = vsel %vm544, %v2660, 0
        %v2728 = vsel %vm544, %v2661, 0
        %v2731 = vsel %vm544, %v2662, 0
        %v2734 = vsel %vm544, %v2663, 0
        %2736 = vmatprep.subr.mxu0 0.0
        %2737 = vmatpush1.msra.mxu0 0.0
        %2738 = vmatprep.subr.mxu0 0.0
        %2739 = vmatpush1.msra.mxu0 0.0
        %2740 = vmatprep.subr.mxu0 0.0
        %2741 = vmatpush1.msra.mxu0 0.0
        %2742 = vmatprep.subr.mxu0 0.0
        %2743 = vmatpush1.msra.mxu0 0.0
        %2744 = vmatprep.subr.mxu0 0.0
        %2745 = vmatpush1.msra.mxu0 0.0
        %2746 = vmatprep.subr.mxu0 0.0
        %2747 = vmatpush1.msra.mxu0 0.0
        %2748 = vmatprep.subr.mxu0 0.0
        %2749 = vmatpush1.msra.mxu0 0.0
        %2750 = vmatprep.subr.mxu0 0.0
        %2751 = vmatpush1.msra.mxu0 0.0
        %2752 = vmatprep.subr.mxu0 %v2654
        %2753 = vmatpush1.msra.mxu0 %v2652
        %2754 = vmatprep.subr.mxu0 %v2648
        %2755 = vmatpush1.msra.mxu0 %v2646
        %2756 = vmatprep.subr.mxu0 %v2642
        %2757 = vmatpush1.msra.mxu0 %v2640
        %2758 = vmatprep.subr.mxu0 %v2636
        %2759 = vmatpush1.msra.mxu0 %v2634
        %2760 = vmatprep.subr.mxu0 %v2630
        %2761 = vmatpush1.msra.mxu0 %v2628
        %2762 = vmatprep.subr.mxu0 %v2624
        %2763 = vmatpush1.msra.mxu0 %v2622
        %2764 = vmatprep.subr.mxu0 %v2618
        %2765 = vmatpush1.msra.mxu0 %v2616
        %2766 = vmatprep.subr.mxu0 %v2612
        %2767 = vmatpush1.msra.mxu0 %v2610
        %2768 = vmatprep.subr.mxu0 0.0
        %2769 = vmatpush2.msra.mxu0 0.0
        %2770 = vmatprep.subr.mxu0 0.0
        %2771 = vmatpush2.msra.mxu0 0.0
        %2772 = vmatprep.subr.mxu0 0.0
        %2773 = vmatpush2.msra.mxu0 0.0
        %2774 = vmatprep.subr.mxu0 0.0
        %2775 = vmatpush2.msra.mxu0 0.0
        %2776 = vmatprep.subr.mxu0 0.0
        %2777 = vmatpush2.msra.mxu0 0.0
        %2778 = vmatprep.subr.mxu0 0.0
        %2779 = vmatpush2.msra.mxu0 0.0
        %2780 = vmatprep.subr.mxu0 0.0
        %2781 = vmatpush2.msra.mxu0 0.0
        %2782 = vmatprep.subr.mxu0 0.0
        %2783 = vmatpush2.msra.mxu0 0.0
        %2784 = vmatprep.subr.mxu0 0.0
        %2785 = vmatpush2.msra.mxu0 0.0
        %2786 = vmatprep.subr.mxu0 0.0
        %2787 = vmatpush2.msra.mxu0 0.0
        %2788 = vmatprep.subr.mxu0 0.0
        %2789 = vmatpush2.msra.mxu0 0.0
        %2790 = vmatprep.subr.mxu0 0.0
        %2791 = vmatpush2.msra.mxu0 0.0
        %2792 = vmatprep.subr.mxu0 0.0
        %2793 = vmatpush2.msra.mxu0 0.0
        %2794 = vmatprep.subr.mxu0 0.0
        %2795 = vmatpush2.msra.mxu0 0.0
        %2796 = vmatprep.subr.mxu0 0.0
        %2797 = vmatpush2.msra.mxu0 0.0
        %2798 = vmatprep.subr.mxu0 0.0
        %2799 = vmatpush2.msra.mxu0 0.0
        %2800 = vmatprep.mubr.f32.mxu0 0.0
        %2801 = vmatmul.mubr.f32.gmra.mxu0 %v2713
        %v2802 = vpop.f32.mrf.mxu0
        %v2803 = vadd.f32 %v2675, %v2802
        %v2804 = vpop.f32.mrf.mxu0
        %v2805 = vadd.f32 %v2675, %v2804
        %2806 = vmatprep.mubr.f32.mxu0 0.0
        %2807 = vmatmul.mubr.f32.gmra.mxu0 %v2716
        %v2808 = vpop.f32.mrf.mxu0
        %v2809 = vadd.f32 %v2680, %v2808
        %v2810 = vpop.f32.mrf.mxu0
        %v2811 = vadd.f32 %v2680, %v2810
        %2812 = vmatprep.mubr.f32.mxu0 0.0
        %2813 = vmatmul.mubr.f32.gmra.mxu0 %v2719
        %v2814 = vpop.f32.mrf.mxu0
        %v2815 = vadd.f32 %v2685, %v2814
        %v2816 = vpop.f32.mrf.mxu0
        %v2817 = vadd.f32 %v2685, %v2816
        %2818 = vmatprep.mubr.f32.mxu0 0.0
        %2819 = vmatmul.mubr.f32.gmra.mxu0 %v2722
        %v2820 = vpop.f32.mrf.mxu0
        %v2821 = vadd.f32 %v2690, %v2820
        %v2822 = vpop.f32.mrf.mxu0
        %v2823 = vadd.f32 %v2690, %v2822
        %2824 = vmatprep.mubr.f32.mxu0 0.0
        %2825 = vmatmul.mubr.f32.gmra.mxu0 %v2725
        %v2826 = vpop.f32.mrf.mxu0
        %v2827 = vadd.f32 %v2695, %v2826
        %v2828 = vpop.f32.mrf.mxu0
        %v2829 = vadd.f32 %v2695, %v2828
        %2830 = vmatprep.mubr.f32.mxu0 0.0
        %2831 = vmatmul.mubr.f32.gmra.mxu0 %v2728
        %v2832 = vpop.f32.mrf.mxu0
        %v2833 = vadd.f32 %v2700, %v2832
        %v2834 = vpop.f32.mrf.mxu0
        %v2835 = vadd.f32 %v2700, %v2834
        %2836 = vmatprep.mubr.f32.mxu0 0.0
        %2837 = vmatmul.mubr.f32.gmra.mxu0 %v2731
        %v2838 = vpop.f32.mrf.mxu0
        %v2839 = vadd.f32 %v2705, %v2838
        %v2840 = vpop.f32.mrf.mxu0
        %v2841 = vadd.f32 %v2705, %v2840
        %2842 = vmatprep.mubr.f32.mxu0 0.0
        %2843 = vmatmul.mubr.f32.gmra.mxu0 %v2734
        %v2844 = vpop.f32.mrf.mxu0
        %v2845 = vadd.f32 %v2710, %v2844
        %v2846 = vpop.f32.mrf.mxu0
        %v2847 = vadd.f32 %v2710, %v2846
        %2848 = vdwg.mxu0
        %v2849 = vadd.f32 %v2803, %v456
        %v2850 = vadd.f32 %v2805, %v457
        %v2851 = vadd.f32 %v2809, %v458
        %v2852 = vadd.f32 %v2811, %v459
        %v2853 = vadd.f32 %v2815, %v460
        %v2854 = vadd.f32 %v2817, %v461
        %v2855 = vadd.f32 %v2821, %v462
        %v2856 = vadd.f32 %v2823, %v463
        %v2857 = vadd.f32 %v2827, %v464
        %v2858 = vadd.f32 %v2829, %v465
        %v2859 = vadd.f32 %v2833, %v466
        %v2860 = vadd.f32 %v2835, %v467
        %v2861 = vadd.f32 %v2839, %v468
        %v2862 = vadd.f32 %v2841, %v469
        %v2863 = vadd.f32 %v2845, %v470
        %v2864 = vadd.f32 %v2847, %v471
        %2865 = vst [vmem:[%s450] sm:$0xff] %v2849
        %2866 = vst [vmem:[%s450 + $0x8] sm:$0xff] %v2850
        %2867 = vst [vmem:[%s450 + $0x10] sm:$0xff] %v2851
        %2868 = vst [vmem:[%s450 + $0x18] sm:$0xff] %v2852
        %2869 = vst [vmem:[%s450 + $0x20] sm:$0xff] %v2853
        %2870 = vst [vmem:[%s450 + $0x28] sm:$0xff] %v2854
        %2871 = vst [vmem:[%s450 + $0x30] sm:$0xff] %v2855
        %2872 = vst [vmem:[%s450 + $0x38] sm:$0xff] %v2856
        %2873 = vst [vmem:[%s450 + $0x40] sm:$0xff] %v2857
        %2874 = vst [vmem:[%s450 + $0x48] sm:$0xff] %v2858
        %2875 = vst [vmem:[%s450 + $0x50] sm:$0xff] %v2859
        %2876 = vst [vmem:[%s450 + $0x58] sm:$0xff] %v2860
        %2877 = vst [vmem:[%s450 + $0x60] sm:$0xff] %v2861
        %2878 = vst [vmem:[%s450 + $0x68] sm:$0xff] %v2862
        %2879 = vst [vmem:[%s450 + $0x70] sm:$0xff] %v2863
        %2880 = vst [vmem:[%s450 + $0x78] sm:$0xff] %v2864
        %s2881 = sand.u32 %s293, 1
        %s2882 = scalar_lea.sflag [#allocation4], %s2881
        %s2883 = sand.u32 %s293, 1
        %s2884 = smul.addr %s2883, 128
        %s2885 = scalar_lea.vmem [#allocation8], %s2884
        // Predicated region
        $region81: #{tpu_custom_call.1} parent=67 // pred_check
          %p2886 = pneg %p303
        $region82: #{tpu_custom_call.1} parent=67 // pred_check_branch
          %2888 = sbr.rel (%p2886) target = $region84
        $region83: #{tpu_custom_call.1} parent=67 // pred_region
          %s2890 = ssub.s32 2048, 2048
          %2891 = vsyncadd %s2882, %s2890
          %s2892 = smul.addr %s28, 16
          %s2893 = smul.addr %s2892, 128
          %s2894 = scalar_lea.hbm %s12, %s2893
          %s2895 = sshll.u32 %s2885, 4
          %s2896 = int_to_ptr.vmem [resolvable:$true] %s2895
          %2901 = dma.vmem_to_hbm [thread:$0]  %s2896, 2048, %s2894, %s2882, 256, 256, 16
        $region84: #{tpu_custom_call.1} parent=67 // pred_fallthru
          _
      $region68: #{tpu_custom_call.1} parent=5 // pred_fallthru
        _
      %p2902 = scmp.le.s32.totalorder 2, %s23
      // Predicated region
      $region85: #{tpu_custom_call.1} parent=5 // pred_check
        %p2903 = pneg %p2902
      $region86: #{tpu_custom_call.1} parent=5 // pred_check_branch
        %2905 = sbr.rel (%p2903) target = $region88
      $region87: #{tpu_custom_call.1} parent=5 // pred_region
        %s2906 = ssub.s32 %s23, 2
        // Predicated region
        $region89: #{tpu_custom_call.1} parent=87 // pred_check
          %p2907 = pneg %p309
        $region90: #{tpu_custom_call.1} parent=87 // pred_check_branch
          %2909 = sbr.rel (%p2907) target = $region92
        $region91: #{tpu_custom_call.1} parent=87 // pred_region
          %s2910 = sand.u32 %s294, 1
          %s2911 = scalar_lea.sflag [#allocation4], %s2910
          %s2912 = sand.u32 %s294, 1
          %s2913 = smul.addr %s2912, 128
          %s2914 = scalar_lea.vmem [#allocation8], %s2913
          %2915 = dma.done %s2911, 2048
        $region92: #{tpu_custom_call.1} parent=87 // pred_fallthru
          _
      $region88: #{tpu_custom_call.1} parent=5 // pred_fallthru
        _
    $region6: #{tpu_custom_call.1} parent=1 // loop_footer
      %s27 = sadd.s32 1, %s23
    $region7: #{tpu_custom_call.1} parent=1 // loop_footer_branch
      %22 = sbr.rel target = $region3
    $region8: #{tpu_custom_call.1} parent=1 // loop_exit
      _
    %2916 = vsyncpa [#allocation3], 1
    %s2917 = scalar_lea.sflag [#allocation3], 1
    %2918 = vsyncpa %s2917, 1
    %2919 = vsyncpa [#allocation6], 1
    %2920 = vsyncpa [#allocation4], 1
    %s2921 = scalar_lea.sflag [#allocation4], 1
    %2922 = vsyncpa %s2921, 1

</llo_original>
